<compile_context>
chip_gen: v7x
topology: tpu7x:2x2x1
jax: 0.10.0
libtpu: 0.0.40
codegen_flags: <defaults>
</compile_context>

<pallas_src>
import functools
import math

import jax
import jax.numpy as jnp
from jax.experimental import pallas as pl
from jax.experimental.pallas import tpu as pltpu


# ----------------------------- fused PMA kernel -----------------------------
def _pma_kernel(qbd_ref, resid_ref, sel_ref, x_ref, pm_ref,
                wkv_ref, bkv_ref, wo_ref, bo_ref, o_ref,
                *, num_heads, num_seeds, pma_mode):
    f32 = jnp.float32
    bf16 = jnp.bfloat16

    BB, NK, DK = x_ref.shape
    HNQ, DV = qbd_ref.shape          # HNQ = H * num_seeds
    H = num_heads
    NQ = num_seeds

    # ---- fused K/V projection: one (BB*NK, DK) @ (DK, 2*DV) MXU call over the whole block.
    x2 = x_ref[...].reshape(BB * NK, DK)                            # bf16, no f32 round trip
    kv = (jnp.dot(x2, wkv_ref[...], preferred_element_type=f32)
          + bkv_ref[...].astype(f32))                               # (BB*NK, 2*DV) f32
    kv = kv.astype(bf16).reshape(BB, NK, 2 * DV)
    k = kv[:, :, :DV]                                               # (BB, NK, DV) bf16
    v = kv[:, :, DV:]                                               # (BB, NK, DV) bf16

    # ---- all-head scores in one batched dot: qbd is block-diagonal over heads
    #      (head h rows only keep lanes [h*HD,(h+1)*HD)) with 1/sqrt(DV) pre-folded,
    #      so there is no per-head slicing or concatenation.
    q_bd = jnp.broadcast_to(qbd_ref[...], (BB, HNQ, DV))            # bf16
    scores = jnp.einsum('bqd,bkd->bqk', q_bd, k,
                        preferred_element_type=f32)                 # (BB, HNQ, NK)

    mask = pm_ref[...]                                              # (BB, 1, NK) f32, 0/1
    scores = jnp.where(mask != 0.0, scores, jnp.float32(-1e12))
    m = jnp.max(scores, axis=-1, keepdims=True)
    p = jnp.exp(scores - m)
    denom = jnp.sum(p, axis=-1, keepdims=True)
    a = (p * pl.reciprocal(denom, approx=True)) * mask              # A = softmax * pad_mask

    # ---- PV for all heads in one batched dot; head h's rows only keep their own lane
    #      block (precomputed selector), then fold the H sublane blocks into (BB, NQ, DV).
    pv = jnp.einsum('bqk,bkd->bqd', a.astype(bf16), v,
                    preferred_element_type=f32)                     # (BB, HNQ, DV)
    pv = pv * sel_ref[...]                                          # zero other heads' lanes
    attn = pv[:, 0:NQ, :]
    for h in range(1, H):
        attn = attn + pv[:, h * NQ:(h + 1) * NQ, :]                 # (BB, NQ, DV)

    resid = resid_ref[...]                                          # (NQ, DV) f32
    if pma_mode == "pre_gptj":
        # resid already holds Q + relu(fc_o(Q))  (batch-invariant, hoisted to the wrapper)
        out = resid + attn
    else:
        # post_normal / pre_normal (ln=False): O = Q + attn; O = O + relu(fc_o(O))
        o = resid + attn                                            # (BB, NQ, DV)
        o2 = (jnp.dot(o.reshape(BB * NQ, DV).astype(bf16), wo_ref[...],
                      preferred_element_type=f32)
              + bo_ref[...].astype(f32))
        out = o + jnp.maximum(o2, 0.0).reshape(BB, NQ, DV)

    o_ref[...] = out.astype(o_ref.dtype)


# ----------------------------- wrapper -----------------------------
def pma_forward(seeds, x, pad_mask, params, *, num_heads,
                pma_mode="post_normal", block_batch=None):
    """seeds: (num_seeds, compress_dim); x: (B, Nk, dim); pad_mask: (B, Nk) of 0/1."""
    f32, bf16 = jnp.float32, jnp.bfloat16
    B, NK, DK = x.shape
    NQ, DV = seeds.shape
    H = num_heads
    HD = DV // H

    # ---- batch-invariant precompute (hoisted out of the per-step kernel) ----
    seeds = seeds.astype(f32)
    q_proj = jnp.dot(seeds, params["wq"].astype(f32)) + params["bq"].astype(f32)   # fc_q(S)
    head_mask = (jnp.arange(DV, dtype=jnp.int32)[None, :] // HD
                 == jnp.arange(H, dtype=jnp.int32)[:, None]).astype(f32)           # (H, DV)
    scale = 1.0 / math.sqrt(DV)                       # PyTorch divides by sqrt(dim_V)
    # Block-diagonal Q: heads stacked on sublanes, softmax scale folded in.
    q_bd = ((q_proj * scale)[None, :, :] * head_mask[:, None, :]
            ).reshape(H * NQ, DV).astype(bf16)                                      # (H*NQ, DV)
    # Lane selector used to fold per-head PV back into a lane-dense (NQ, DV) slab.
    sel = jnp.broadcast_to(head_mask[:, None, :], (H, NQ, DV)).reshape(H * NQ, DV)  # (H*NQ, DV)

    if pma_mode == "pre_gptj":
        resid = seeds + jnp.maximum(
            jnp.dot(seeds, params["wo"].astype(f32)) + params["bo"].astype(f32), 0.0)
    else:
        resid = seeds

    wkv = jnp.concatenate([params["wk"], params["wv"]], axis=1).astype(bf16)  # (DK, 2*DV)
    bkv = jnp.concatenate([params["bk"], params["bv"]], axis=1).astype(f32)   # (1, 2*DV)
    wo = params["wo"].astype(bf16)
    bo = params["bo"].astype(f32)

    xb = x.astype(bf16)                               # halve the streaming HBM->VMEM bytes
    pm3 = pad_mask.reshape(B, 1, NK).astype(f32)

    # ---- batch blocking: amortize per-step overhead; keep grid >= 2 steps (v7x megacore).
    if block_batch is None:
        block_batch = 8
    BB = max(1, min(block_batch, B))
    if B > 1 and B // BB < 2:
        BB = max(1, B // 2)
    while B % BB:
        BB -= 1
    grid = (B // BB,)

    kernel = functools.partial(_pma_kernel, num_heads=H, num_seeds=NQ, pma_mode=pma_mode)

    in_specs = [
        pl.BlockSpec((H * NQ, DV), lambda b: (0, 0)),       # q_bd (bf16, resident)
        pl.BlockSpec((NQ, DV), lambda b: (0, 0)),           # resid (f32, resident)
        pl.BlockSpec((H * NQ, DV), lambda b: (0, 0)),       # head selector (f32, resident)
        pl.BlockSpec((BB, NK, DK), lambda b: (b, 0, 0)),    # X block (bf16, streaming)
        pl.BlockSpec((BB, 1, NK), lambda b: (b, 0, 0)),     # pad_mask block (f32)
        pl.BlockSpec((DK, 2 * DV), lambda b: (0, 0)),       # wk|wv fused (bf16, resident)
        pl.BlockSpec((1, 2 * DV), lambda b: (0, 0)),        # bk|bv fused (f32)
        pl.BlockSpec((DV, DV), lambda b: (0, 0)),           # wo (bf16, resident)
        pl.BlockSpec((1, DV), lambda b: (0, 0)),            # bo (f32)
    ]
    out_specs = pl.BlockSpec((BB, NQ, DV), lambda b: (b, 0, 0))

    return pl.pallas_call(
        kernel,
        grid=grid,
        in_specs=in_specs,
        out_specs=out_specs,
        out_shape=jax.ShapeDtypeStruct((B, NQ, DV), jnp.float32),
        compiler_params=pltpu.CompilerParams(
            dimension_semantics=("parallel",),
            # Explicit scoped-VMEM cap: comfortable on v5e/v6e (128 MiB physical) and still
            # under v7x's 64 MiB physical. Re-derive BB downward for v7x if blocks grow.
            vmem_limit_bytes=48 * 1024 * 1024,
        ),
    )(q_bd, resid, sel, xb, pm3, wkv, bkv, wo, bo)


# ----------------------------- pure-JAX reference (PyTorch semantics) -----------------------------
def _pma_reference(seeds, x, pad_mask, params, *, num_heads, pma_mode):
    B, NK, _ = x.shape
    NQ, DV = seeds.shape
    H = num_heads
    HD = DV // H
    Q = jnp.broadcast_to(seeds[None].astype(jnp.float32), (B, NQ, DV))
    X = x.astype(jnp.float32)
    q_ = Q @ params["wq"] + params["bq"]
    k_ = X @ params["wk"] + params["bk"]
    v_ = X @ params["wv"] + params["bv"]

    def split(t):
        return t.reshape(B, -1, H, HD).transpose(0, 2, 1, 3)

    qh, kh, vh = split(q_), split(k_), split(v_)
    score = jnp.einsum('bhqd,bhkd->bhqk', qh, kh) / math.sqrt(DV)
    pm = pad_mask.astype(jnp.float32)[:, None, None, :]
    score = jnp.where(pm == 0, -1e12, score)
    A = jax.nn.softmax(score, axis=-1) * pm
    O = jnp.einsum('bhqk,bhkd->bhqd', A, vh).transpose(0, 2, 1, 3).reshape(B, NQ, DV)
    if pma_mode == "pre_gptj":
        return Q + O + jax.nn.relu(Q @ params["wo"] + params["bo"])
    O = Q + O
    return O + jax.nn.relu(O @ params["wo"] + params["bo"])


# ----------------------------- deterministic example -----------------------------
if __name__ == "__main__":
    key = jax.random.PRNGKey(0)
    (k_s, k_x, k_wq, k_bq, k_wk, k_bk, k_wv, k_bv, k_wo, k_bo) = jax.random.split(key, 10)

    B, NK, DIM = 8, 16, 32                    # batch, set size, input feature dim (dim_K)
    COMPRESS, HEADS, NUM_SEEDS = 64, 4, 8     # compress_dim (dim_V), num_heads, num_seeds

    def xavier(k, shape):
        bound = math.sqrt(6.0 / (shape[0] + shape[1]))
        return jax.random.uniform(k, shape, jnp.float32, -bound, bound)

    params = {
        "wq": xavier(k_wq, (COMPRESS, COMPRESS)),
        "bq": 0.01 * jax.random.normal(k_bq, (1, COMPRESS), jnp.float32),
        "wk": xavier(k_wk, (DIM, COMPRESS)),
        "bk": 0.01 * jax.random.normal(k_bk, (1, COMPRESS), jnp.float32),
        "wv": xavier(k_wv, (DIM, COMPRESS)),
        "bv": 0.01 * jax.random.normal(k_bv, (1, COMPRESS), jnp.float32),
        "wo": xavier(k_wo, (COMPRESS, COMPRESS)),
        "bo": 0.01 * jax.random.normal(k_bo, (1, COMPRESS), jnp.float32),
    }
    seeds = xavier(k_s, (NUM_SEEDS, COMPRESS))                    # PMA learned parameter S
    x = jax.random.normal(k_x, (B, NK, DIM), jnp.float32)
    lengths = jnp.array([16, 11, 16, 5, 9, 16, 13, 7], jnp.int32)  # padded batch elements
    pad_mask = (jnp.arange(NK)[None, :] < lengths[:, None]).astype(jnp.float32)  # (B, NK)

    ok = True
    for mode in ("post_normal", "pre_gptj"):
        fwd = jax.jit(functools.partial(pma_forward, num_heads=HEADS, pma_mode=mode))
        out = fwd(seeds, x, pad_mask, params)
        jax.block_until_ready(out)
        ref = _pma_reference(seeds, x, pad_mask, params, num_heads=HEADS, pma_mode=mode)
        assert out.shape == (B, NUM_SEEDS, COMPRESS)
        assert bool(jnp.all(jnp.isfinite(out)))
        ok &= bool(jnp.allclose(out, ref, atol=5e-2, rtol=5e-2))   # bf16 MXU tolerance

    assert ok
    print("KERNEL_OK")
</pallas_src>

<mosaic_0001>
module attributes {stable_mosaic.version = 11 : i64} {
  func.func @_pma_kernel(%arg0: i32, %arg1: memref<32x64xbf16, #tpu.memory_space<vmem>>, %arg2: memref<8x64xf32, #tpu.memory_space<vmem>>, %arg3: memref<32x64xf32, #tpu.memory_space<vmem>>, %arg4: memref<4x16x32xbf16, #tpu.memory_space<vmem>>, %arg5: memref<4x1x16xf32, #tpu.memory_space<vmem>>, %arg6: memref<32x128xbf16, #tpu.memory_space<vmem>>, %arg7: memref<1x128xf32, #tpu.memory_space<vmem>>, %arg8: memref<64x64xbf16, #tpu.memory_space<vmem>>, %arg9: memref<1x64xf32, #tpu.memory_space<vmem>>, %arg10: memref<4x8x64xf32, #tpu.memory_space<vmem>>) attributes {dimension_semantics = [#tpu.dimension_semantics<parallel>], iteration_bounds = array<i64: 2>, scalar_prefetch = 0 : i64, scratch_operands = 0 : i64, tpu.core_type = #tpu.core_type<tc>, window_params = [{pipeline_mode = #tpu.pipeline_mode<synchronous>, transform_indices = @transform_0, window_bounds = array<i64: 32, 64>}, {pipeline_mode = #tpu.pipeline_mode<synchronous>, transform_indices = @transform_1, window_bounds = array<i64: 8, 64>}, {pipeline_mode = #tpu.pipeline_mode<synchronous>, transform_indices = @transform_2, window_bounds = array<i64: 32, 64>}, {transform_indices = @transform_3, window_bounds = array<i64: 4, 16, 32>}, {transform_indices = @transform_4, window_bounds = array<i64: 4, 1, 16>}, {pipeline_mode = #tpu.pipeline_mode<synchronous>, transform_indices = @transform_5, window_bounds = array<i64: 32, 128>}, {pipeline_mode = #tpu.pipeline_mode<synchronous>, transform_indices = @transform_6, window_bounds = array<i64: 1, 128>}, {pipeline_mode = #tpu.pipeline_mode<synchronous>, transform_indices = @transform_7, window_bounds = array<i64: 64, 64>}, {pipeline_mode = #tpu.pipeline_mode<synchronous>, transform_indices = @transform_8, window_bounds = array<i64: 1, 64>}, {transform_indices = @transform_9, window_bounds = array<i64: 4, 8, 64>}]} {
    %c0 = arith.constant 0 : index
    %c0_0 = arith.constant 0 : index
    %c0_1 = arith.constant 0 : index
    %0 = vector.load %arg4[%c0, %c0_0, %c0_1] : memref<4x16x32xbf16, #tpu.memory_space<vmem>>, vector<4x16x32xbf16>
    %1 = vector.shape_cast %0 : vector<4x16x32xbf16> to vector<64x32xbf16>
    %c0_2 = arith.constant 0 : index
    %c0_3 = arith.constant 0 : index
    %2 = vector.load %arg6[%c0_2, %c0_3] : memref<32x128xbf16, #tpu.memory_space<vmem>>, vector<32x128xbf16>
    %cst = arith.constant dense<0.000000e+00> : vector<64x128xf32>
    %3 = tpu.matmul %1, %2, %cst {dimension_numbers = #tpu.dot_dimension_numbers<[1], [0], [0], [1], [0, 0, 1, 1], [], []>} : vector<64x32xbf16>, vector<32x128xbf16>, vector<64x128xf32> -> vector<64x128xf32>
    %c0_4 = arith.constant 0 : index
    %c0_5 = arith.constant 0 : index
    %4 = vector.load %arg7[%c0_4, %c0_5] : memref<1x128xf32, #tpu.memory_space<vmem>>, vector<1x128xf32>
    %5 = vector.broadcast %4 : vector<1x128xf32> to vector<64x128xf32>
    %6 = arith.addf %3, %5 : vector<64x128xf32>
    %7 = arith.truncf %6 : vector<64x128xf32> to vector<64x128xbf16>
    %8 = vector.shape_cast %7 : vector<64x128xbf16> to vector<4x16x128xbf16>
    %9 = vector.extract_strided_slice %8 {offsets = [0, 0, 0], sizes = [4, 16, 64], strides = [1, 1, 1]} : vector<4x16x128xbf16> to vector<4x16x64xbf16>
    %10 = vector.extract_strided_slice %8 {offsets = [0, 0, 64], sizes = [4, 16, 64], strides = [1, 1, 1]} : vector<4x16x128xbf16> to vector<4x16x64xbf16>
    %c0_6 = arith.constant 0 : index
    %c0_7 = arith.constant 0 : index
    %11 = vector.load %arg1[%c0_6, %c0_7] : memref<32x64xbf16, #tpu.memory_space<vmem>>, vector<32x64xbf16>
    %12 = vector.shape_cast %11 : vector<32x64xbf16> to vector<1x32x64xbf16>
    %13 = vector.broadcast %12 : vector<1x32x64xbf16> to vector<4x32x64xbf16>
    "tpu.trace_start"() <{level = 10 : i32, message = "bqd,bkd->bqk"}> : () -> ()
    %cst_8 = arith.constant dense<0.000000e+00> : vector<4x32x16xf32>
    %14 = tpu.matmul %13, %9, %cst_8 {dimension_numbers = #tpu.dot_dimension_numbers<[2], [2], [1], [1], [0, 0, 0, 1, 1, 1], [0], [0]>} : vector<4x32x64xbf16>, vector<4x16x64xbf16>, vector<4x32x16xf32> -> vector<4x32x16xf32>
    "tpu.trace_stop"() : () -> ()
    %c0_9 = arith.constant 0 : index
    %c0_10 = arith.constant 0 : index
    %c0_11 = arith.constant 0 : index
    %15 = vector.load %arg5[%c0_9, %c0_10, %c0_11] : memref<4x1x16xf32, #tpu.memory_space<vmem>>, vector<4x1x16xf32>
    %cst_12 = arith.constant 0.000000e+00 : f32
    %16 = vector.broadcast %cst_12 : f32 to vector<4x1x16xf32>
    %17 = arith.cmpf one, %15, %16 : vector<4x1x16xf32>
    %cst_13 = arith.constant -9.99999995E+11 : f32
    %18 = vector.shape_cast %17 : vector<4x1x16xi1> to vector<4x1x16xi1>
    %19 = vector.broadcast %18 : vector<4x1x16xi1> to vector<4x32x16xi1>
    %20 = vector.broadcast %cst_13 : f32 to vector<4x32x16xf32>
    %21 = arith.select %19, %14, %20 : vector<4x32x16xi1>, vector<4x32x16xf32>
    %cst_14 = arith.constant dense<0xFF800000> : vector<4x32xf32>
    %22 = vector.multi_reduction <maximumf>, %21, %cst_14 [2] : vector<4x32x16xf32> to vector<4x32xf32>
    %23 = vector.shape_cast %22 : vector<4x32xf32> to vector<4x32x1xf32>
    %24 = vector.broadcast %23 : vector<4x32x1xf32> to vector<4x32x16xf32>
    %25 = arith.subf %21, %24 : vector<4x32x16xf32>
    %26 = math.exp %25 : vector<4x32x16xf32>
    %cst_15 = arith.constant dense<0.000000e+00> : vector<4x32xf32>
    %27 = vector.multi_reduction <add>, %26, %cst_15 [2] : vector<4x32x16xf32> to vector<4x32xf32>
    %28 = vector.shape_cast %27 : vector<4x32xf32> to vector<4x32x1xf32>
    %29 = tpu.reciprocal %28 {approx = true} : vector<4x32x1xf32> -> vector<4x32x1xf32>
    %30 = vector.broadcast %29 : vector<4x32x1xf32> to vector<4x32x16xf32>
    %31 = arith.mulf %26, %30 : vector<4x32x16xf32>
    %32 = vector.broadcast %15 : vector<4x1x16xf32> to vector<4x32x16xf32>
    %33 = arith.mulf %31, %32 : vector<4x32x16xf32>
    %34 = arith.truncf %33 : vector<4x32x16xf32> to vector<4x32x16xbf16>
    "tpu.trace_start"() <{level = 10 : i32, message = "bqk,bkd->bqd"}> : () -> ()
    %cst_16 = arith.constant dense<0.000000e+00> : vector<4x32x64xf32>
    %35 = tpu.matmul %34, %10, %cst_16 {dimension_numbers = #tpu.dot_dimension_numbers<[2], [1], [1], [2], [0, 0, 0, 1, 1, 2], [0], [0]>} : vector<4x32x16xbf16>, vector<4x16x64xbf16>, vector<4x32x64xf32> -> vector<4x32x64xf32>
    "tpu.trace_stop"() : () -> ()
    %c0_17 = arith.constant 0 : index
    %c0_18 = arith.constant 0 : index
    %36 = vector.load %arg3[%c0_17, %c0_18] : memref<32x64xf32, #tpu.memory_space<vmem>>, vector<32x64xf32>
    %37 = vector.shape_cast %36 : vector<32x64xf32> to vector<1x32x64xf32>
    %38 = vector.broadcast %37 : vector<1x32x64xf32> to vector<4x32x64xf32>
    %39 = arith.mulf %35, %38 : vector<4x32x64xf32>
    %40 = vector.extract_strided_slice %39 {offsets = [0, 0, 0], sizes = [4, 8, 64], strides = [1, 1, 1]} : vector<4x32x64xf32> to vector<4x8x64xf32>
    %41 = vector.extract_strided_slice %39 {offsets = [0, 8, 0], sizes = [4, 8, 64], strides = [1, 1, 1]} : vector<4x32x64xf32> to vector<4x8x64xf32>
    %42 = arith.addf %40, %41 : vector<4x8x64xf32>
    %43 = vector.extract_strided_slice %39 {offsets = [0, 16, 0], sizes = [4, 8, 64], strides = [1, 1, 1]} : vector<4x32x64xf32> to vector<4x8x64xf32>
    %44 = arith.addf %42, %43 : vector<4x8x64xf32>
    %45 = vector.extract_strided_slice %39 {offsets = [0, 24, 0], sizes = [4, 8, 64], strides = [1, 1, 1]} : vector<4x32x64xf32> to vector<4x8x64xf32>
    %46 = arith.addf %44, %45 : vector<4x8x64xf32>
    %c0_19 = arith.constant 0 : index
    %c0_20 = arith.constant 0 : index
    %47 = vector.load %arg2[%c0_19, %c0_20] : memref<8x64xf32, #tpu.memory_space<vmem>>, vector<8x64xf32>
    %48 = vector.shape_cast %47 : vector<8x64xf32> to vector<1x8x64xf32>
    %49 = vector.broadcast %48 : vector<1x8x64xf32> to vector<4x8x64xf32>
    %50 = arith.addf %49, %46 : vector<4x8x64xf32>
    %51 = vector.shape_cast %50 : vector<4x8x64xf32> to vector<32x64xf32>
    %52 = arith.truncf %51 : vector<32x64xf32> to vector<32x64xbf16>
    %c0_21 = arith.constant 0 : index
    %c0_22 = arith.constant 0 : index
    %53 = vector.load %arg8[%c0_21, %c0_22] : memref<64x64xbf16, #tpu.memory_space<vmem>>, vector<64x64xbf16>
    %cst_23 = arith.constant dense<0.000000e+00> : vector<32x64xf32>
    %54 = tpu.matmul %52, %53, %cst_23 {dimension_numbers = #tpu.dot_dimension_numbers<[1], [0], [0], [1], [0, 0, 1, 1], [], []>} : vector<32x64xbf16>, vector<64x64xbf16>, vector<32x64xf32> -> vector<32x64xf32>
    %c0_24 = arith.constant 0 : index
    %c0_25 = arith.constant 0 : index
    %55 = vector.load %arg9[%c0_24, %c0_25] : memref<1x64xf32, #tpu.memory_space<vmem>>, vector<1x64xf32>
    %56 = vector.broadcast %55 : vector<1x64xf32> to vector<32x64xf32>
    %57 = arith.addf %54, %56 : vector<32x64xf32>
    %cst_26 = arith.constant 0.000000e+00 : f32
    %58 = vector.broadcast %cst_26 : f32 to vector<32x64xf32>
    %59 = arith.maximumf %57, %58 : vector<32x64xf32>
    %60 = vector.shape_cast %59 : vector<32x64xf32> to vector<4x8x64xf32>
    %61 = arith.addf %50, %60 : vector<4x8x64xf32>
    %c0_27 = arith.constant 0 : index
    %c0_28 = arith.constant 0 : index
    %c0_29 = arith.constant 0 : index
    %62 = vector.load %arg10[%c0_27, %c0_28, %c0_29] : memref<4x8x64xf32, #tpu.memory_space<vmem>>, vector<4x8x64xf32>
    tpu.vector_store %arg10[%c0_27, %c0_28, %c0_29], %61 {strides = array<i32>} : memref<4x8x64xf32, #tpu.memory_space<vmem>>, vector<4x8x64xf32>,
    return
  }
  func.func @transform_0(%arg0: i32) -> (i32, i32) {
    %c0_i32 = arith.constant 0 : i32
    %c0_i32_0 = arith.constant 0 : i32
    %c0_i32_1 = arith.constant 0 : i32
    return %c0_i32, %c0_i32_0 : i32, i32
  }
  func.func @transform_1(%arg0: i32) -> (i32, i32) {
    %c0_i32 = arith.constant 0 : i32
    %c0_i32_0 = arith.constant 0 : i32
    %c0_i32_1 = arith.constant 0 : i32
    return %c0_i32, %c0_i32_0 : i32, i32
  }
  func.func @transform_2(%arg0: i32) -> (i32, i32) {
    %c0_i32 = arith.constant 0 : i32
    %c0_i32_0 = arith.constant 0 : i32
    %c0_i32_1 = arith.constant 0 : i32
    return %c0_i32, %c0_i32_0 : i32, i32
  }
  func.func @transform_3(%arg0: i32) -> (i32, i32, i32) {
    %c0_i32 = arith.constant 0 : i32
    %c0_i32_0 = arith.constant 0 : i32
    %c0_i32_1 = arith.constant 0 : i32
    return %arg0, %c0_i32, %c0_i32_0 : i32, i32, i32
  }
  func.func @transform_4(%arg0: i32) -> (i32, i32, i32) {
    %c0_i32 = arith.constant 0 : i32
    %c0_i32_0 = arith.constant 0 : i32
    %c0_i32_1 = arith.constant 0 : i32
    return %arg0, %c0_i32, %c0_i32_0 : i32, i32, i32
  }
  func.func @transform_5(%arg0: i32) -> (i32, i32) {
    %c0_i32 = arith.constant 0 : i32
    %c0_i32_0 = arith.constant 0 : i32
    %c0_i32_1 = arith.constant 0 : i32
    return %c0_i32, %c0_i32_0 : i32, i32
  }
  func.func @transform_6(%arg0: i32) -> (i32, i32) {
    %c0_i32 = arith.constant 0 : i32
    %c0_i32_0 = arith.constant 0 : i32
    %c0_i32_1 = arith.constant 0 : i32
    return %c0_i32, %c0_i32_0 : i32, i32
  }
  func.func @transform_7(%arg0: i32) -> (i32, i32) {
    %c0_i32 = arith.constant 0 : i32
    %c0_i32_0 = arith.constant 0 : i32
    %c0_i32_1 = arith.constant 0 : i32
    return %c0_i32, %c0_i32_0 : i32, i32
  }
  func.func @transform_8(%arg0: i32) -> (i32, i32) {
    %c0_i32 = arith.constant 0 : i32
    %c0_i32_0 = arith.constant 0 : i32
    %c0_i32_1 = arith.constant 0 : i32
    return %c0_i32, %c0_i32_0 : i32, i32
  }
  func.func @transform_9(%arg0: i32) -> (i32, i32, i32) {
    %c0_i32 = arith.constant 0 : i32
    %c0_i32_0 = arith.constant 0 : i32
    %c0_i32_1 = arith.constant 0 : i32
    return %arg0, %c0_i32, %c0_i32_0 : i32, i32, i32
  }
}

</mosaic_0001>

<llo_original>
// kernel: pma_forward.1
$region0: #{pma_forward.1}
  #allocation0 [shape = 'u32[]', space=smem, size = 0x4, offset = 0x4, fixed_abs, tag = 'smem constant byte address 0x4 - core index']
  #allocation1 [shape = 'u32[144,128]{1,0:T(1,128)}', space=vmem, size = 0x12000, scoped, tag = 'internal scratch']
  %s0 = inlined_call_operand.vmem [shape: bf16[32,64], index: 0, kind: input, shape index: {}]
  %s1 = inlined_call_operand.vmem [shape: f32[8,64], index: 1, kind: input, shape index: {}]
  %s2 = inlined_call_operand.vmem [shape: f32[32,64], index: 2, kind: input, shape index: {}]
  %s3 = inlined_call_operand.vmem [shape: bf16[8,16,32], index: 3, kind: input, shape index: {}]
  %s4 = inlined_call_operand.vmem [shape: f32[8,1,16], index: 4, kind: input, shape index: {}]
  %s5 = inlined_call_operand.vmem [shape: bf16[32,128], index: 5, kind: input, shape index: {}]
  %s6 = inlined_call_operand.vmem [shape: f32[1,128], index: 6, kind: input, shape index: {}]
  %s7 = inlined_call_operand.vmem [shape: bf16[64,64], index: 7, kind: input, shape index: {}]
  %s8 = inlined_call_operand.vmem [shape: f32[1,64], index: 8, kind: input, shape index: {}]
  %s9 = inlined_call_operand.hbm [shape: f32[8,8,64], index: 9, kind: output, shape index: {}]
  %s10 = sld [smem:[#allocation0]]
  $region69: #{pma_forward.1} parent=0
    _
  %s12 = ssub.s32 1, %s10
  %s13 = scalar_select 0, %s12, %s10
  $region1: #{pma_forward.1} parent=0
    #allocation2 [shape = 'u8[32768]{0}', space=vmem, size = 0x8000, scoped, tag = 'output window, operand 0']
    #allocation3 [shape = 's32[2]{0}', space=sflag, size = 0x8, scoped, tag = 'scoped memory for pma_forward.1']
    %14 = vsyncpa [#allocation3], 0
    %s15 = scalar_lea.sflag [#allocation3], 1
    %16 = vsyncpa %s15, 0
    loop: start=0, step=1, limit=4
    $region2: #{pma_forward.1} parent=1 // loop_pre_header
      _
    $region3: #{pma_forward.1} parent=1 // loop_header
      %s18 = sphi 0, %s22
      %p19 = scmp.ge.s32.totalorder %s18, 4
      %s26 = sphi 0, %s26
      %s28 = sphi 0, %s26
      %s29 = sphi 0, %s28
      %s43 = sphi 0, %s29
      %s47 = sphi 0, %s47
      %s49 = sphi 0, %s47
      %s50 = sphi 0, %s49
      %s64 = sphi 0, %s50
      %s68 = sphi 0, %s68
      %s70 = sphi 0, %s68
      %s71 = sphi 0, %s70
      %s85 = sphi 0, %s71
      %s91 = sphi 0, %s93
      %s94 = sphi 0, %s91
      %s95 = sphi 0, %s94
      %s111 = sphi 0, %s95
      %s117 = sphi 0, %s119
      %s120 = sphi 0, %s117
      %s121 = sphi 0, %s120
      %s137 = sphi 0, %s121
      %s141 = sphi 0, %s141
      %s143 = sphi 0, %s141
      %s144 = sphi 0, %s143
      %s158 = sphi 0, %s144
      %s162 = sphi 0, %s162
      %s164 = sphi 0, %s162
      %s165 = sphi 0, %s164
      %s179 = sphi 0, %s165
      %s183 = sphi 0, %s183
      %s185 = sphi 0, %s183
      %s186 = sphi 0, %s185
      %s200 = sphi 0, %s186
      %s204 = sphi 0, %s204
      %s206 = sphi 0, %s204
      %s207 = sphi 0, %s206
      %s221 = sphi 0, %s207
      %s227 = sphi 0, %s229
      %s230 = sphi 0, %s227
      %s231 = sphi 0, %s230
      %s247 = sphi 0, %s231
    $region4: #{pma_forward.1} parent=1 // loop_header_branch
      %21 = sbr.rel (%p19) target = $region8
    $region5: #{pma_forward.1} parent=1 // loop_body
      %s23 = ssub.s32 %s18, 1
      %s24 = ssub.s32 %s18, 2
      %s25 = sadd.s32 %s18, 1
      %s27 = sadd.s32 %s26, 1
      %p30 = scmp.eq.s32.totalorder %s18, 1
      %p31 = scmp.ne.s32.totalorder %s26, %s28
      %p32 = scmp.eq.s32.totalorder %s18, 0
      %p33 = por %p31, %p32
      %p34 = scmp.ne.s32.totalorder %s26, %s28
      %p35 = scmp.eq.s32.totalorder %s23, 1
      %p36 = por %p34, %p35
      %p37 = scmp.ne.s32.totalorder %s28, %s29
      %p38 = scmp.eq.s32.totalorder %s23, 0
      %p39 = por %p37, %p38
      %p40 = scmp.ne.s32.totalorder %s28, %s29
      %p41 = scmp.eq.s32.totalorder %s24, 1
      %p42 = por %p40, %p41
      %p44 = scmp.ne.s32.totalorder %s29, %s43
      %p45 = scmp.eq.s32.totalorder %s24, 0
      %p46 = por %p44, %p45
      %s48 = sadd.s32 %s47, 1
      %p51 = scmp.eq.s32.totalorder %s18, 1
      %p52 = scmp.ne.s32.totalorder %s47, %s49
      %p53 = scmp.eq.s32.totalorder %s18, 0
      %p54 = por %p52, %p53
      %p55 = scmp.ne.s32.totalorder %s47, %s49
      %p56 = scmp.eq.s32.totalorder %s23, 1
      %p57 = por %p55, %p56
      %p58 = scmp.ne.s32.totalorder %s49, %s50
      %p59 = scmp.eq.s32.totalorder %s23, 0
      %p60 = por %p58, %p59
      %p61 = scmp.ne.s32.totalorder %s49, %s50
      %p62 = scmp.eq.s32.totalorder %s24, 1
      %p63 = por %p61, %p62
      %p65 = scmp.ne.s32.totalorder %s50, %s64
      %p66 = scmp.eq.s32.totalorder %s24, 0
      %p67 = por %p65, %p66
      %s69 = sadd.s32 %s68, 1
      %p72 = scmp.eq.s32.totalorder %s18, 1
      %p73 = scmp.ne.s32.totalorder %s68, %s70
      %p74 = scmp.eq.s32.totalorder %s18, 0
      %p75 = por %p73, %p74
      %p76 = scmp.ne.s32.totalorder %s68, %s70
      %p77 = scmp.eq.s32.totalorder %s23, 1
      %p78 = por %p76, %p77
      %p79 = scmp.ne.s32.totalorder %s70, %s71
      %p80 = scmp.eq.s32.totalorder %s23, 0
      %p81 = por %p79, %p80
      %p82 = scmp.ne.s32.totalorder %s70, %s71
      %p83 = scmp.eq.s32.totalorder %s24, 1
      %p84 = por %p82, %p83
      %p86 = scmp.ne.s32.totalorder %s71, %s85
      %p87 = scmp.eq.s32.totalorder %s24, 0
      %p88 = por %p86, %p87
      %s89 = ssub.s32 %s18, %s25
      %p90 = scmp.eq.s32.totalorder %s89, 0
      %s92 = sadd.s32 %s91, 1
      %s93 = scalar_select %p90, %s91, %s92
      %p96 = pneg %p90
      %p97 = scmp.eq.s32.totalorder %s18, 1
      %p98 = por %p96, %p97
      %p99 = scmp.ne.s32.totalorder %s91, %s94
      %p100 = scmp.eq.s32.totalorder %s18, 0
      %p101 = por %p99, %p100
      %p102 = scmp.ne.s32.totalorder %s91, %s94
      %p103 = scmp.eq.s32.totalorder %s23, 1
      %p104 = por %p102, %p103
      %p105 = scmp.ne.s32.totalorder %s94, %s95
      %p106 = scmp.eq.s32.totalorder %s23, 0
      %p107 = por %p105, %p106
      %p108 = scmp.ne.s32.totalorder %s94, %s95
      %p109 = scmp.eq.s32.totalorder %s24, 1
      %p110 = por %p108, %p109
      %p112 = scmp.ne.s32.totalorder %s95, %s111
      %p113 = scmp.eq.s32.totalorder %s24, 0
      %p114 = por %p112, %p113
      %s115 = ssub.s32 %s18, %s25
      %p116 = scmp.eq.s32.totalorder %s115, 0
      %s118 = sadd.s32 %s117, 1
      %s119 = scalar_select %p116, %s117, %s118
      %p122 = pneg %p116
      %p123 = scmp.eq.s32.totalorder %s18, 1
      %p124 = por %p122, %p123
      %p125 = scmp.ne.s32.totalorder %s117, %s120
      %p126 = scmp.eq.s32.totalorder %s18, 0
      %p127 = por %p125, %p126
      %p128 = scmp.ne.s32.totalorder %s117, %s120
      %p129 = scmp.eq.s32.totalorder %s23, 1
      %p130 = por %p128, %p129
      %p131 = scmp.ne.s32.totalorder %s120, %s121
      %p132 = scmp.eq.s32.totalorder %s23, 0
      %p133 = por %p131, %p132
      %p134 = scmp.ne.s32.totalorder %s120, %s121
      %p135 = scmp.eq.s32.totalorder %s24, 1
      %p136 = por %p134, %p135
      %p138 = scmp.ne.s32.totalorder %s121, %s137
      %p139 = scmp.eq.s32.totalorder %s24, 0
      %p140 = por %p138, %p139
      %s142 = sadd.s32 %s141, 1
      %p145 = scmp.eq.s32.totalorder %s18, 1
      %p146 = scmp.ne.s32.totalorder %s141, %s143
      %p147 = scmp.eq.s32.totalorder %s18, 0
      %p148 = por %p146, %p147
      %p149 = scmp.ne.s32.totalorder %s141, %s143
      %p150 = scmp.eq.s32.totalorder %s23, 1
      %p151 = por %p149, %p150
      %p152 = scmp.ne.s32.totalorder %s143, %s144
      %p153 = scmp.eq.s32.totalorder %s23, 0
      %p154 = por %p152, %p153
      %p155 = scmp.ne.s32.totalorder %s143, %s144
      %p156 = scmp.eq.s32.totalorder %s24, 1
      %p157 = por %p155, %p156
      %p159 = scmp.ne.s32.totalorder %s144, %s158
      %p160 = scmp.eq.s32.totalorder %s24, 0
      %p161 = por %p159, %p160
      %s163 = sadd.s32 %s162, 1
      %p166 = scmp.eq.s32.totalorder %s18, 1
      %p167 = scmp.ne.s32.totalorder %s162, %s164
      %p168 = scmp.eq.s32.totalorder %s18, 0
      %p169 = por %p167, %p168
      %p170 = scmp.ne.s32.totalorder %s162, %s164
      %p171 = scmp.eq.s32.totalorder %s23, 1
      %p172 = por %p170, %p171
      %p173 = scmp.ne.s32.totalorder %s164, %s165
      %p174 = scmp.eq.s32.totalorder %s23, 0
      %p175 = por %p173, %p174
      %p176 = scmp.ne.s32.totalorder %s164, %s165
      %p177 = scmp.eq.s32.totalorder %s24, 1
      %p178 = por %p176, %p177
      %p180 = scmp.ne.s32.totalorder %s165, %s179
      %p181 = scmp.eq.s32.totalorder %s24, 0
      %p182 = por %p180, %p181
      %s184 = sadd.s32 %s183, 1
      %p187 = scmp.eq.s32.totalorder %s18, 1
      %p188 = scmp.ne.s32.totalorder %s183, %s185
      %p189 = scmp.eq.s32.totalorder %s18, 0
      %p190 = por %p188, %p189
      %p191 = scmp.ne.s32.totalorder %s183, %s185
      %p192 = scmp.eq.s32.totalorder %s23, 1
      %p193 = por %p191, %p192
      %p194 = scmp.ne.s32.totalorder %s185, %s186
      %p195 = scmp.eq.s32.totalorder %s23, 0
      %p196 = por %p194, %p195
      %p197 = scmp.ne.s32.totalorder %s185, %s186
      %p198 = scmp.eq.s32.totalorder %s24, 1
      %p199 = por %p197, %p198
      %p201 = scmp.ne.s32.totalorder %s186, %s200
      %p202 = scmp.eq.s32.totalorder %s24, 0
      %p203 = por %p201, %p202
      %s205 = sadd.s32 %s204, 1
      %p208 = scmp.eq.s32.totalorder %s18, 1
      %p209 = scmp.ne.s32.totalorder %s204, %s206
      %p210 = scmp.eq.s32.totalorder %s18, 0
      %p211 = por %p209, %p210
      %p212 = scmp.ne.s32.totalorder %s204, %s206
      %p213 = scmp.eq.s32.totalorder %s23, 1
      %p214 = por %p212, %p213
      %p215 = scmp.ne.s32.totalorder %s206, %s207
      %p216 = scmp.eq.s32.totalorder %s23, 0
      %p217 = por %p215, %p216
      %p218 = scmp.ne.s32.totalorder %s206, %s207
      %p219 = scmp.eq.s32.totalorder %s24, 1
      %p220 = por %p218, %p219
      %p222 = scmp.ne.s32.totalorder %s207, %s221
      %p223 = scmp.eq.s32.totalorder %s24, 0
      %p224 = por %p222, %p223
      %s225 = ssub.s32 %s18, %s25
      %p226 = scmp.eq.s32.totalorder %s225, 0
      %s228 = sadd.s32 %s227, 1
      %s229 = scalar_select %p226, %s227, %s228
      %p232 = pneg %p226
      %p233 = scmp.eq.s32.totalorder %s18, 1
      %p234 = por %p232, %p233
      %p235 = scmp.ne.s32.totalorder %s227, %s230
      %p236 = scmp.eq.s32.totalorder %s18, 0
      %p237 = por %p235, %p236
      %p238 = scmp.ne.s32.totalorder %s227, %s230
      %p239 = scmp.eq.s32.totalorder %s23, 1
      %p240 = por %p238, %p239
      %p241 = scmp.ne.s32.totalorder %s230, %s231
      %p242 = scmp.eq.s32.totalorder %s23, 0
      %p243 = por %p241, %p242
      %p244 = scmp.ne.s32.totalorder %s230, %s231
      %p245 = scmp.eq.s32.totalorder %s24, 1
      %p246 = por %p244, %p245
      %p248 = scmp.ne.s32.totalorder %s231, %s247
      %p249 = scmp.eq.s32.totalorder %s24, 0
      %p250 = por %p248, %p249
      %p251 = scmp.le.s32.totalorder 1, %s18
      %p252 = scmp.lt.s32.totalorder %s18, 3
      %p253 = pnand %p251, %p252
      %p254 = pneg %p253
      // Predicated region
      $region9: #{pma_forward.1} parent=5 // pred_check
        _
      $region10: #{pma_forward.1} parent=5 // pred_check_branch
        %256 = sbr.rel (%p253) target = $region12
      $region11: #{pma_forward.1} parent=5 // pred_region
        %s257 = ssub.s32 %s18, 1
        // Predicated region
        $region13: #{pma_forward.1} parent=11 // pred_check
          %p258 = pneg %p39
        $region14: #{pma_forward.1} parent=11 // pred_check_branch
          %260 = sbr.rel (%p258) target = $region16
        $region15: #{pma_forward.1} parent=11 // pred_region
          _
        $region16: #{pma_forward.1} parent=11 // pred_fallthru
          _
        // Predicated region
        $region17: #{pma_forward.1} parent=11 // pred_check
          %p261 = pneg %p60
        $region18: #{pma_forward.1} parent=11 // pred_check_branch
          %263 = sbr.rel (%p261) target = $region20
        $region19: #{pma_forward.1} parent=11 // pred_region
          _
        $region20: #{pma_forward.1} parent=11 // pred_fallthru
          _
        // Predicated region
        $region21: #{pma_forward.1} parent=11 // pred_check
          %p264 = pneg %p81
        $region22: #{pma_forward.1} parent=11 // pred_check_branch
          %266 = sbr.rel (%p264) target = $region24
        $region23: #{pma_forward.1} parent=11 // pred_region
          _
        $region24: #{pma_forward.1} parent=11 // pred_fallthru
          _
        // Predicated region
        $region25: #{pma_forward.1} parent=11 // pred_check
          %p267 = pneg %p154
        $region26: #{pma_forward.1} parent=11 // pred_check_branch
          %269 = sbr.rel (%p267) target = $region28
        $region27: #{pma_forward.1} parent=11 // pred_region
          _
        $region28: #{pma_forward.1} parent=11 // pred_fallthru
          _
        // Predicated region
        $region29: #{pma_forward.1} parent=11 // pred_check
          %p270 = pneg %p175
        $region30: #{pma_forward.1} parent=11 // pred_check_branch
          %272 = sbr.rel (%p270) target = $region32
        $region31: #{pma_forward.1} parent=11 // pred_region
          _
        $region32: #{pma_forward.1} parent=11 // pred_fallthru
          _
        // Predicated region
        $region33: #{pma_forward.1} parent=11 // pred_check
          %p273 = pneg %p196
        $region34: #{pma_forward.1} parent=11 // pred_check_branch
          %275 = sbr.rel (%p273) target = $region36
        $region35: #{pma_forward.1} parent=11 // pred_region
          _
        $region36: #{pma_forward.1} parent=11 // pred_fallthru
          _
        // Predicated region
        $region37: #{pma_forward.1} parent=11 // pred_check
          %p276 = pneg %p217
        $region38: #{pma_forward.1} parent=11 // pred_check_branch
          %278 = sbr.rel (%p276) target = $region40
        $region39: #{pma_forward.1} parent=11 // pred_region
          _
        $region40: #{pma_forward.1} parent=11 // pred_fallthru
          _
      $region12: #{pma_forward.1} parent=5 // pred_fallthru
        _
      %p279 = scmp.lt.s32.totalorder %s18, 2
      // Predicated region
      $region41: #{pma_forward.1} parent=5 // pred_check
        %p280 = pneg %p279
      $region42: #{pma_forward.1} parent=5 // pred_check_branch
        %282 = sbr.rel (%p280) target = $region44
      $region43: #{pma_forward.1} parent=5 // pred_region
        // Predicated region
        $region45: #{pma_forward.1} parent=43 // pred_check
          %p283 = pneg %p101
        $region46: #{pma_forward.1} parent=43 // pred_check_branch
          %285 = sbr.rel (%p283) target = $region48
        $region47: #{pma_forward.1} parent=43 // pred_region
          %s286 = smul.u32 4, %s18
          %p287 = scmp.lt.s32.totalorder %s286, 7
          %s288 = scalar_select %p287, %s286, 7
          %s289 = smul.addr %s288, 2
          %s290 = smul.addr %s289, 4
          %s291 = scalar_lea.vmem %s3, %s290
          %s292 = smul.u32 4, %s18
        $region48: #{pma_forward.1} parent=43 // pred_fallthru
          _
        // Predicated region
        $region49: #{pma_forward.1} parent=43 // pred_check
          %p293 = pneg %p127
        $region50: #{pma_forward.1} parent=43 // pred_check_branch
          %295 = sbr.rel (%p293) target = $region52
        $region51: #{pma_forward.1} parent=43 // pred_region
          %s296 = smul.u32 4, %s18
          %p297 = scmp.lt.s32.totalorder %s296, 7
          %s298 = scalar_select %p297, %s296, 7
          %s299 = scalar_lea.vmem %s4, %s298
          %s300 = smul.u32 4, %s18
        $region52: #{pma_forward.1} parent=43 // pred_fallthru
          _
      $region44: #{pma_forward.1} parent=5 // pred_fallthru
        _
      %p301 = scmp.le.s32.totalorder 1, %s18
      %p302 = scmp.lt.s32.totalorder %s18, 3
      %p303 = pnand %p301, %p302
      %p304 = pneg %p303
      // Predicated region
      $region53: #{pma_forward.1} parent=5 // pred_check
        _
      $region54: #{pma_forward.1} parent=5 // pred_check_branch
        %306 = sbr.rel (%p303) target = $region56
      $region55: #{pma_forward.1} parent=5 // pred_region
        %s307 = ssub.s32 %s18, 1
        %p308 = pneg %p39
        %p309 = pneg %p36
        %p310 = pneg %p60
        %p311 = pneg %p57
        %p312 = pneg %p81
        %p313 = pneg %p78
        %s314 = smul.u32 4, %s23
        %p315 = scmp.lt.s32.totalorder %s314, 7
        %s316 = scalar_select %p315, %s314, 7
        %s317 = smul.addr %s316, 2
        %s318 = smul.addr %s317, 4
        %s319 = scalar_lea.vmem %s3, %s318
        %p320 = pneg %p107
        %p321 = pneg %p104
        %s322 = smul.u32 4, %s23
        %p323 = scmp.lt.s32.totalorder %s322, 7
        %s324 = scalar_select %p323, %s322, 7
        %s325 = scalar_lea.vmem %s4, %s324
        %p326 = pneg %p133
        %p327 = pneg %p130
        %p328 = pneg %p154
        %p329 = pneg %p151
        %p330 = pneg %p175
        %p331 = pneg %p172
        %p332 = pneg %p196
        %p333 = pneg %p193
        %p334 = pneg %p217
        %p335 = pneg %p214
        %p336 = pneg %p243
        %p337 = pneg %p240
        %s338 = sand.u32 %s230, 1
        %s339 = scalar_lea.sflag [#allocation3], %s338
        %s340 = sand.u32 %s230, 1
        %s341 = smul.addr %s340, 32
        %s342 = scalar_lea.vmem [#allocation2], %s341
        %s343 = smul.u32 4, %s23
        %p344 = scmp.lt.s32.totalorder %s343, 7
        %s345 = scalar_select %p344, %s343, 7
        %s346 = smul.addr %s345, 2
        %s347 = smul.addr %s346, 4
        %s348 = scalar_lea.vmem %s3, %s347
        %s349 = smul.u32 4, %s23
        %s350 = smul.u32 4, %s23
        %p351 = scmp.lt.s32.totalorder %s350, 7
        %s352 = scalar_select %p351, %s350, 7
        %s353 = scalar_lea.vmem %s4, %s352
        %s354 = smul.u32 4, %s23
        %s355 = smul.u32 4, %s23
        %v357 = vld [vmem:[%s348] sm:$0xf]
        %v358 = vld [vmem:[%s348 + $0x4] sm:$0xf]
        %v359 = vld [vmem:[%s348 + $0x8] sm:$0xf]
        %v360 = vld [vmem:[%s348 + $0xc] sm:$0xf]
        %v361 = vld [vmem:[%s348 + $0x10] sm:$0xf]
        %v362 = vld [vmem:[%s348 + $0x14] sm:$0xf]
        %v363 = vld [vmem:[%s348 + $0x18] sm:$0xf]
        %v364 = vld [vmem:[%s348 + $0x1c] sm:$0xf]
        %v365 = vld [vmem:[%s5] sm:$0xf]
        %v366 = vld [vmem:[%s5 + $0x4] sm:$0xf]
        %v367 = vld [vmem:[%s5 + $0x8] sm:$0xf]
        %v368 = vld [vmem:[%s5 + $0xc] sm:$0xf]
        %v369 = vld [vmem:[%s6] sm:$0x1]
        %v371 = vlaneseq
        %v372 = vshrl.u32 %v371, 7
        %v373 = vsub.s32 0, %v372
        %v374 = vrot.slane %v369, %v373
        %v384 = vunpack.c.l.b16 %v357
        %v385 = vunpack.c.l.b16 %v358
        %v386 = vunpack.c.l.b16 %v359
        %v387 = vunpack.c.l.b16 %v360
        %v388 = vunpack.c.l.b16 %v361
        %v389 = vunpack.c.l.b16 %v362
        %v390 = vunpack.c.l.b16 %v363
        %v391 = vunpack.c.l.b16 %v364
        %v392 = vpack.c.b16 %v385, %v384
        %v393 = vpack.c.b16 %v387, %v386
        %v394 = vpack.c.b16 %v389, %v388
        %v395 = vpack.c.b16 %v391, %v390
        %v400 = vunpack.c.l.b16 %v365
        %v401 = vunpack.c.l.b16 %v366
        %v402 = vunpack.c.l.b16 %v367
        %v403 = vunpack.c.l.b16 %v368
        %v404 = vpack.c.b16 %v401, %v400
        %v405 = vpack.c.b16 %v403, %v402
        %vm408 = vcmask 261120
        %v410 = vsel %vm408, %v392, 0
        %v413 = vsel %vm408, %v393, 0
        %v416 = vsel %vm408, %v394, 0
        %v419 = vsel %vm408, %v395, 0
        %421 = vmatprep.subr.bf16.mxu0 0
        %422 = vmatpush1.bf16.msra.mxu0 %v404
        %423 = vmatprep.subr.bf16.mxu0 0
        %424 = vmatpush1.bf16.msra.mxu0 %v405
        %425 = vmatprep.subr.bf16.mxu0 0
        %426 = vmatpush1.bf16.msra.mxu0 0
        %427 = vmatprep.subr.bf16.mxu0 0
        %428 = vmatpush1.bf16.msra.mxu0 0
        %429 = vmatprep.subr.bf16.mxu0 0
        %430 = vmatpush1.bf16.msra.mxu0 0
        %431 = vmatprep.subr.bf16.mxu0 0
        %432 = vmatpush1.bf16.msra.mxu0 0
        %433 = vmatprep.subr.bf16.mxu0 0
        %434 = vmatpush1.bf16.msra.mxu0 0
        %435 = vmatprep.subr.bf16.mxu0 0
        %436 = vmatpush1.bf16.msra.mxu0 0
        %437 = vmatprep.subr.bf16.mxu0 0
        %438 = vmatpush1.bf16.msra.mxu0 0
        %439 = vmatprep.subr.bf16.mxu0 0
        %440 = vmatpush1.bf16.msra.mxu0 0
        %441 = vmatprep.subr.bf16.mxu0 0
        %442 = vmatpush1.bf16.msra.mxu0 0
        %443 = vmatprep.subr.bf16.mxu0 0
        %444 = vmatpush1.bf16.msra.mxu0 0
        %445 = vmatprep.subr.bf16.mxu0 0
        %446 = vmatpush1.bf16.msra.mxu0 0
        %447 = vmatprep.subr.bf16.mxu0 0
        %448 = vmatpush1.bf16.msra.mxu0 0
        %449 = vmatprep.subr.bf16.mxu0 0
        %450 = vmatpush1.bf16.msra.mxu0 0
        %451 = vmatprep.subr.bf16.mxu0 0
        %452 = vmatpush1.bf16.msra.mxu0 0
        %453 = vmatprep.mubr.bf16.mxu0 0
        %454 = vmatmul.mubr.bf16.gmra.mrb[0].mxu0 %v410
        %v455 = vpop.f32.mrb[0].mxu0
        %v456 = vadd.f32 %v374, %v455
        %v457 = vpop.f32.mrb[0].mxu0
        %v458 = vpop.f32.mrb[0].mxu0
        %v459 = vadd.f32 %v374, %v458
        %v460 = vpop.f32.mrb[0].mxu0
        %461 = vmatprep.mubr.bf16.mxu0 0
        %462 = vmatmul.mubr.bf16.gmra.mrb[0].mxu0 %v413
        %v463 = vpop.f32.mrb[0].mxu0
        %v464 = vadd.f32 %v374, %v463
        %v465 = vpop.f32.mrb[0].mxu0
        %v466 = vpop.f32.mrb[0].mxu0
        %v467 = vadd.f32 %v374, %v466
        %v468 = vpop.f32.mrb[0].mxu0
        %469 = vmatprep.mubr.bf16.mxu0 0
        %470 = vmatmul.mubr.bf16.gmra.mrb[0].mxu0 %v416
        %v471 = vpop.f32.mrb[0].mxu0
        %v472 = vadd.f32 %v374, %v471
        %v473 = vpop.f32.mrb[0].mxu0
        %v474 = vpop.f32.mrb[0].mxu0
        %v475 = vadd.f32 %v374, %v474
        %v476 = vpop.f32.mrb[0].mxu0
        %477 = vmatprep.mubr.bf16.mxu0 0
        %478 = vmatmul.mubr.bf16.gmra.mrb[0].mxu0 %v419
        %v479 = vpop.f32.mrb[0].mxu0
        %v480 = vadd.f32 %v374, %v479
        %v481 = vpop.f32.mrb[0].mxu0
        %v482 = vpop.f32.mrb[0].mxu0
        %v483 = vadd.f32 %v374, %v482
        %v484 = vpop.f32.mrb[0].mxu0
        %485 = vdwg.mxu0
        %v486 = vpack.c.bf16 %v459, %v456
        %v487 = vpack.c.bf16 %v467, %v464
        %v488 = vpack.c.bf16 %v475, %v472
        %v489 = vpack.c.bf16 %v483, %v480
        %v490 = vld [vmem:[%s0] sm:$0xf]
        %v491 = vld [vmem:[%s0 + $0x4] sm:$0xf]
        %v492 = vld [vmem:[%s0 + $0x8] sm:$0xf]
        %v493 = vld [vmem:[%s0 + $0xc] sm:$0xf]
        %v498 = vunpack.c.l.b16 %v490
        %v499 = vunpack.c.l.b16 %v491
        %v500 = vunpack.c.l.b16 %v492
        %v501 = vunpack.c.l.b16 %v493
        %v502 = vpack.c.b16 %v499, %v498
        %v503 = vpack.c.b16 %v501, %v500
        %vm504 = vcmask 523264
        %v506 = vsel %vm504, %v502, 0
        %v509 = vsel %vm504, %v503, 0
        %v512 = vsel %vm504, %v486, 0
        %514 = vmatprep.subr.bf16.mxu0 0
        %515 = vmatpush1.bf16.xpose.msra.mxu0 %v512
        %516 = vmatprep.subr.bf16.mxu0 0
        %517 = vmatpush1.bf16.xpose.msra.mxu0 0
        %518 = vmatprep.subr.bf16.mxu0 0
        %519 = vmatpush1.bf16.xpose.msra.mxu0 0
        %520 = vmatprep.subr.bf16.mxu0 0
        %521 = vmatpush1.bf16.xpose.msra.mxu0 0
        %522 = vmatprep.subr.bf16.mxu0 0
        %523 = vmatpush1.bf16.xpose.msra.mxu0 0
        %524 = vmatprep.subr.bf16.mxu0 0
        %525 = vmatpush1.bf16.xpose.msra.mxu0 0
        %526 = vmatprep.subr.bf16.mxu0 0
        %527 = vmatpush1.bf16.xpose.msra.mxu0 0
        %528 = vmatprep.subr.bf16.mxu0 0
        %529 = vmatpush1.bf16.xpose.msra.mxu0 0
        %530 = vmatprep.subr.bf16.mxu0 0
        %531 = vmatpush1.bf16.xpose.msra.mxu0 0
        %532 = vmatprep.subr.bf16.mxu0 0
        %533 = vmatpush1.bf16.xpose.msra.mxu0 0
        %534 = vmatprep.subr.bf16.mxu0 0
        %535 = vmatpush1.bf16.xpose.msra.mxu0 0
        %536 = vmatprep.subr.bf16.mxu0 0
        %537 = vmatpush1.bf16.xpose.msra.mxu0 0
        %538 = vmatprep.subr.bf16.mxu0 0
        %539 = vmatpush1.bf16.xpose.msra.mxu0 0
        %540 = vmatprep.subr.bf16.mxu0 0
        %541 = vmatpush1.bf16.xpose.msra.mxu0 0
        %542 = vmatprep.subr.bf16.mxu0 0
        %543 = vmatpush1.bf16.xpose.msra.mxu0 0
        %544 = vmatprep.subr.bf16.mxu0 0
        %545 = vmatpush1.bf16.xpose.msra.mxu0 0
        %546 = vmatprep.mubr.bf16.mxu0 0
        %547 = vmatmul.mubr.bf16.gmra.mrb[0].mxu0 %v506
        %v548 = vpop.f32.mrb[0].mxu0
        %v549 = vadd.f32 0.0, %v548
        %v550 = vpop.f32.mrb[0].mxu0
        %v551 = vpop.f32.mrb[0].mxu0
        %v552 = vadd.f32 0.0, %v551
        %v553 = vpop.f32.mrb[0].mxu0
        %554 = vmatprep.mubr.bf16.mxu0 0
        %555 = vmatmul.mubr.bf16.gmra.mrb[0].mxu0 %v509
        %v556 = vpop.f32.mrb[0].mxu0
        %v557 = vadd.f32 0.0, %v556
        %v558 = vpop.f32.mrb[0].mxu0
        %v559 = vpop.f32.mrb[0].mxu0
        %v560 = vadd.f32 0.0, %v559
        %v561 = vpop.f32.mrb[0].mxu0
        %562 = vdwg.mxu0
        %v564 = vsel %vm504, %v487, 0
        %566 = vmatprep.subr.bf16.mxu0 0
        %567 = vmatpush1.bf16.xpose.msra.mxu0 %v564
        %568 = vmatprep.subr.bf16.mxu0 0
        %569 = vmatpush1.bf16.xpose.msra.mxu0 0
        %570 = vmatprep.subr.bf16.mxu0 0
        %571 = vmatpush1.bf16.xpose.msra.mxu0 0
        %572 = vmatprep.subr.bf16.mxu0 0
        %573 = vmatpush1.bf16.xpose.msra.mxu0 0
        %574 = vmatprep.subr.bf16.mxu0 0
        %575 = vmatpush1.bf16.xpose.msra.mxu0 0
        %576 = vmatprep.subr.bf16.mxu0 0
        %577 = vmatpush1.bf16.xpose.msra.mxu0 0
        %578 = vmatprep.subr.bf16.mxu0 0
        %579 = vmatpush1.bf16.xpose.msra.mxu0 0
        %580 = vmatprep.subr.bf16.mxu0 0
        %581 = vmatpush1.bf16.xpose.msra.mxu0 0
        %582 = vmatprep.subr.bf16.mxu0 0
        %583 = vmatpush1.bf16.xpose.msra.mxu0 0
        %584 = vmatprep.subr.bf16.mxu0 0
        %585 = vmatpush1.bf16.xpose.msra.mxu0 0
        %586 = vmatprep.subr.bf16.mxu0 0
        %587 = vmatpush1.bf16.xpose.msra.mxu0 0
        %588 = vmatprep.subr.bf16.mxu0 0
        %589 = vmatpush1.bf16.xpose.msra.mxu0 0
        %590 = vmatprep.subr.bf16.mxu0 0
        %591 = vmatpush1.bf16.xpose.msra.mxu0 0
        %592 = vmatprep.subr.bf16.mxu0 0
        %593 = vmatpush1.bf16.xpose.msra.mxu0 0
        %594 = vmatprep.subr.bf16.mxu0 0
        %595 = vmatpush1.bf16.xpose.msra.mxu0 0
        %596 = vmatprep.subr.bf16.mxu0 0
        %597 = vmatpush1.bf16.xpose.msra.mxu0 0
        %598 = vmatprep.mubr.bf16.mxu0 0
        %599 = vmatmul.mubr.bf16.gmra.mrb[0].mxu0 %v506
        %v600 = vpop.f32.mrb[0].mxu0
        %v601 = vadd.f32 0.0, %v600
        %v602 = vpop.f32.mrb[0].mxu0
        %v603 = vpop.f32.mrb[0].mxu0
        %v604 = vadd.f32 0.0, %v603
        %v605 = vpop.f32.mrb[0].mxu0
        %606 = vmatprep.mubr.bf16.mxu0 0
        %607 = vmatmul.mubr.bf16.gmra.mrb[0].mxu0 %v509
        %v608 = vpop.f32.mrb[0].mxu0
        %v609 = vadd.f32 0.0, %v608
        %v610 = vpop.f32.mrb[0].mxu0
        %v611 = vpop.f32.mrb[0].mxu0
        %v612 = vadd.f32 0.0, %v611
        %v613 = vpop.f32.mrb[0].mxu0
        %614 = vdwg.mxu0
        %v616 = vsel %vm504, %v488, 0
        %618 = vmatprep.subr.bf16.mxu0 0
        %619 = vmatpush1.bf16.xpose.msra.mxu0 %v616
        %620 = vmatprep.subr.bf16.mxu0 0
        %621 = vmatpush1.bf16.xpose.msra.mxu0 0
        %622 = vmatprep.subr.bf16.mxu0 0
        %623 = vmatpush1.bf16.xpose.msra.mxu0 0
        %624 = vmatprep.subr.bf16.mxu0 0
        %625 = vmatpush1.bf16.xpose.msra.mxu0 0
        %626 = vmatprep.subr.bf16.mxu0 0
        %627 = vmatpush1.bf16.xpose.msra.mxu0 0
        %628 = vmatprep.subr.bf16.mxu0 0
        %629 = vmatpush1.bf16.xpose.msra.mxu0 0
        %630 = vmatprep.subr.bf16.mxu0 0
        %631 = vmatpush1.bf16.xpose.msra.mxu0 0
        %632 = vmatprep.subr.bf16.mxu0 0
        %633 = vmatpush1.bf16.xpose.msra.mxu0 0
        %634 = vmatprep.subr.bf16.mxu0 0
        %635 = vmatpush1.bf16.xpose.msra.mxu0 0
        %636 = vmatprep.subr.bf16.mxu0 0
        %637 = vmatpush1.bf16.xpose.msra.mxu0 0
        %638 = vmatprep.subr.bf16.mxu0 0
        %639 = vmatpush1.bf16.xpose.msra.mxu0 0
        %640 = vmatprep.subr.bf16.mxu0 0
        %641 = vmatpush1.bf16.xpose.msra.mxu0 0
        %642 = vmatprep.subr.bf16.mxu0 0
        %643 = vmatpush1.bf16.xpose.msra.mxu0 0
        %644 = vmatprep.subr.bf16.mxu0 0
        %645 = vmatpush1.bf16.xpose.msra.mxu0 0
        %646 = vmatprep.subr.bf16.mxu0 0
        %647 = vmatpush1.bf16.xpose.msra.mxu0 0
        %648 = vmatprep.subr.bf16.mxu0 0
        %649 = vmatpush1.bf16.xpose.msra.mxu0 0
        %650 = vmatprep.mubr.bf16.mxu0 0
        %651 = vmatmul.mubr.bf16.gmra.mrb[0].mxu0 %v506
        %v652 = vpop.f32.mrb[0].mxu0
        %v653 = vadd.f32 0.0, %v652
        %v654 = vpop.f32.mrb[0].mxu0
        %v655 = vpop.f32.mrb[0].mxu0
        %v656 = vadd.f32 0.0, %v655
        %v657 = vpop.f32.mrb[0].mxu0
        %658 = vmatprep.mubr.bf16.mxu0 0
        %659 = vmatmul.mubr.bf16.gmra.mrb[0].mxu0 %v509
        %v660 = vpop.f32.mrb[0].mxu0
        %v661 = vadd.f32 0.0, %v660
        %v662 = vpop.f32.mrb[0].mxu0
        %v663 = vpop.f32.mrb[0].mxu0
        %v664 = vadd.f32 0.0, %v663
        %v665 = vpop.f32.mrb[0].mxu0
        %666 = vdwg.mxu0
        %v668 = vsel %vm504, %v489, 0
        %670 = vmatprep.subr.bf16.mxu0 0
        %671 = vmatpush1.bf16.xpose.msra.mxu0 %v668
        %672 = vmatprep.subr.bf16.mxu0 0
        %673 = vmatpush1.bf16.xpose.msra.mxu0 0
        %674 = vmatprep.subr.bf16.mxu0 0
        %675 = vmatpush1.bf16.xpose.msra.mxu0 0
        %676 = vmatprep.subr.bf16.mxu0 0
        %677 = vmatpush1.bf16.xpose.msra.mxu0 0
        %678 = vmatprep.subr.bf16.mxu0 0
        %679 = vmatpush1.bf16.xpose.msra.mxu0 0
        %680 = vmatprep.subr.bf16.mxu0 0
        %681 = vmatpush1.bf16.xpose.msra.mxu0 0
        %682 = vmatprep.subr.bf16.mxu0 0
        %683 = vmatpush1.bf16.xpose.msra.mxu0 0
        %684 = vmatprep.subr.bf16.mxu0 0
        %685 = vmatpush1.bf16.xpose.msra.mxu0 0
        %686 = vmatprep.subr.bf16.mxu0 0
        %687 = vmatpush1.bf16.xpose.msra.mxu0 0
        %688 = vmatprep.subr.bf16.mxu0 0
        %689 = vmatpush1.bf16.xpose.msra.mxu0 0
        %690 = vmatprep.subr.bf16.mxu0 0
        %691 = vmatpush1.bf16.xpose.msra.mxu0 0
        %692 = vmatprep.subr.bf16.mxu0 0
        %693 = vmatpush1.bf16.xpose.msra.mxu0 0
        %694 = vmatprep.subr.bf16.mxu0 0
        %695 = vmatpush1.bf16.xpose.msra.mxu0 0
        %696 = vmatprep.subr.bf16.mxu0 0
        %697 = vmatpush1.bf16.xpose.msra.mxu0 0
        %698 = vmatprep.subr.bf16.mxu0 0
        %699 = vmatpush1.bf16.xpose.msra.mxu0 0
        %700 = vmatprep.subr.bf16.mxu0 0
        %701 = vmatpush1.bf16.xpose.msra.mxu0 0
        %702 = vmatprep.mubr.bf16.mxu0 0
        %703 = vmatmul.mubr.bf16.gmra.mrb[0].mxu0 %v506
        %v704 = vpop.f32.mrb[0].mxu0
        %v705 = vadd.f32 0.0, %v704
        %v706 = vpop.f32.mrb[0].mxu0
        %v707 = vpop.f32.mrb[0].mxu0
        %v708 = vadd.f32 0.0, %v707
        %v709 = vpop.f32.mrb[0].mxu0
        %710 = vmatprep.mubr.bf16.mxu0 0
        %711 = vmatmul.mubr.bf16.gmra.mrb[0].mxu0 %v509
        %v712 = vpop.f32.mrb[0].mxu0
        %v713 = vadd.f32 0.0, %v712
        %v714 = vpop.f32.mrb[0].mxu0
        %v715 = vpop.f32.mrb[0].mxu0
        %v716 = vadd.f32 0.0, %v715
        %v717 = vpop.f32.mrb[0].mxu0
        %718 = vdwg.mxu0
        %v719 = vld [vmem:[%s353] sm:$0x1]
        %v720 = vld [vmem:[%s353 + $0x1] sm:$0x1]
        %v721 = vld [vmem:[%s353 + $0x2] sm:$0x1]
        %v722 = vld [vmem:[%s353 + $0x3] sm:$0x1]
        %vm723 = vcmp.ne.f32.partialorder %v719, 0.0
        %vm724 = vcmp.ne.f32.partialorder %v720, 0.0
        %vm725 = vcmp.ne.f32.partialorder %v721, 0.0
        %vm726 = vcmp.ne.f32.partialorder %v722, 0.0
        %v727 = vsel %vm723, 1, 0
        %v728 = vsel %vm724, 1, 0
        %v729 = vsel %vm725, 1, 0
        %v730 = vsel %vm726, 1, 0
        %v731 = vlaneseq
        %v732 = vshrl.u32 %v731, 7
        %v733 = vsub.s32 0, %v732
        %v734 = vrot.slane %v727, %v733
        %v735 = vlaneseq
        %v736 = vshrl.u32 %v735, 7
        %v737 = vsub.s32 0, %v736
        %v738 = vrot.slane %v728, %v737
        %v739 = vlaneseq
        %v740 = vshrl.u32 %v739, 7
        %v741 = vsub.s32 0, %v740
        %v742 = vrot.slane %v729, %v741
        %v743 = vlaneseq
        %v744 = vshrl.u32 %v743, 7
        %v745 = vsub.s32 0, %v744
        %v746 = vrot.slane %v730, %v745
        %vm747 = vcmp.eq.s32.totalorder %v734, 1
        %vm748 = vcmp.eq.s32.totalorder %v738, 1
        %vm749 = vcmp.eq.s32.totalorder %v742, 1
        %vm750 = vcmp.eq.s32.totalorder %v746, 1
        %v751 = vsel %vm747, %v549, -1e+12
        %v752 = vsel %vm747, %v552, -1e+12
        %v753 = vsel %vm747, %v557, -1e+12
        %v754 = vsel %vm747, %v560, -1e+12
        %v755 = vsel %vm748, %v601, -1e+12
        %v756 = vsel %vm748, %v604, -1e+12
        %v757 = vsel %vm748, %v609, -1e+12
        %v758 = vsel %vm748, %v612, -1e+12
        %v759 = vsel %vm749, %v653, -1e+12
        %v760 = vsel %vm749, %v656, -1e+12
        %v761 = vsel %vm749, %v661, -1e+12
        %v762 = vsel %vm749, %v664, -1e+12
        %v763 = vsel %vm750, %v705, -1e+12
        %v764 = vsel %vm750, %v708, -1e+12
        %v765 = vsel %vm750, %v713, -1e+12
        %v766 = vsel %vm750, %v716, -1e+12
        %vm767 = vcmask 130048
        %v768 = vsel %vm767, %v751, -inf
        %769 = vmax.xlane.f32.xlu0 %v768
        %v770 = vpop.xlane.xlu0 %769
        %v771 = vsel %vm767, %v752, -inf
        %772 = vmax.xlane.f32.xlu0 %v771
        %v773 = vpop.xlane.xlu0 %772
        %v774 = vsel %vm767, %v753, -inf
        %775 = vmax.xlane.f32.xlu0 %v774
        %v776 = vpop.xlane.xlu0 %775
        %v777 = vsel %vm767, %v754, -inf
        %778 = vmax.xlane.f32.xlu0 %v777
        %v779 = vpop.xlane.xlu0 %778
        %v780 = vsel %vm767, %v755, -inf
        %781 = vmax.xlane.f32.xlu0 %v780
        %v782 = vpop.xlane.xlu0 %781
        %v783 = vsel %vm767, %v756, -inf
        %784 = vmax.xlane.f32.xlu0 %v783
        %v785 = vpop.xlane.xlu0 %784
        %v786 = vsel %vm767, %v757, -inf
        %787 = vmax.xlane.f32.xlu0 %v786
        %v788 = vpop.xlane.xlu0 %787
        %v789 = vsel %vm767, %v758, -inf
        %790 = vmax.xlane.f32.xlu0 %v789
        %v791 = vpop.xlane.xlu0 %790
        %v792 = vsel %vm767, %v759, -inf
        %793 = vmax.xlane.f32.xlu0 %v792
        %v794 = vpop.xlane.xlu0 %793
        %v795 = vsel %vm767, %v760, -inf
        %796 = vmax.xlane.f32.xlu0 %v795
        %v797 = vpop.xlane.xlu0 %796
        %v798 = vsel %vm767, %v761, -inf
        %799 = vmax.xlane.f32.xlu0 %v798
        %v800 = vpop.xlane.xlu0 %799
        %v801 = vsel %vm767, %v762, -inf
        %802 = vmax.xlane.f32.xlu0 %v801
        %v803 = vpop.xlane.xlu0 %802
        %v804 = vsel %vm767, %v763, -inf
        %805 = vmax.xlane.f32.xlu0 %v804
        %v806 = vpop.xlane.xlu0 %805
        %v807 = vsel %vm767, %v764, -inf
        %808 = vmax.xlane.f32.xlu0 %v807
        %v809 = vpop.xlane.xlu0 %808
        %v810 = vsel %vm767, %v765, -inf
        %811 = vmax.xlane.f32.xlu0 %v810
        %v812 = vpop.xlane.xlu0 %811
        %v813 = vsel %vm767, %v766, -inf
        %814 = vmax.xlane.f32.xlu0 %v813
        %v815 = vpop.xlane.xlu0 %814
        %v816 = vsub.f32 %v751, %v770
        %v817 = vsub.f32 %v752, %v773
        %v818 = vsub.f32 %v753, %v776
        %v819 = vsub.f32 %v754, %v779
        %v820 = vsub.f32 %v755, %v782
        %v821 = vsub.f32 %v756, %v785
        %v822 = vsub.f32 %v757, %v788
        %v823 = vsub.f32 %v758, %v791
        %v824 = vsub.f32 %v759, %v794
        %v825 = vsub.f32 %v760, %v797
        %v826 = vsub.f32 %v761, %v800
        %v827 = vsub.f32 %v762, %v803
        %v828 = vsub.f32 %v763, %v806
        %v829 = vsub.f32 %v764, %v809
        %v830 = vsub.f32 %v765, %v812
        %v831 = vsub.f32 %v766, %v815
        %v832 = vmul.f32 %v816, 1.442695
        %v833 = vpow.pop %v832
        %v834 = vmul.f32 %v817, 1.442695
        %v835 = vpow.pop %v834
        %v836 = vmul.f32 %v818, 1.442695
        %v837 = vpow.pop %v836
        %v838 = vmul.f32 %v819, 1.442695
        %v839 = vpow.pop %v838
        %v840 = vmul.f32 %v820, 1.442695
        %v841 = vpow.pop %v840
        %v842 = vmul.f32 %v821, 1.442695
        %v843 = vpow.pop %v842
        %v844 = vmul.f32 %v822, 1.442695
        %v845 = vpow.pop %v844
        %v846 = vmul.f32 %v823, 1.442695
        %v847 = vpow.pop %v846
        %v848 = vmul.f32 %v824, 1.442695
        %v849 = vpow.pop %v848
        %v850 = vmul.f32 %v825, 1.442695
        %v851 = vpow.pop %v850
        %v852 = vmul.f32 %v826, 1.442695
        %v853 = vpow.pop %v852
        %v854 = vmul.f32 %v827, 1.442695
        %v855 = vpow.pop %v854
        %v856 = vmul.f32 %v828, 1.442695
        %v857 = vpow.pop %v856
        %v858 = vmul.f32 %v829, 1.442695
        %v859 = vpow.pop %v858
        %v860 = vmul.f32 %v830, 1.442695
        %v861 = vpow.pop %v860
        %v862 = vmul.f32 %v831, 1.442695
        %v863 = vpow.pop %v862
        %v864 = vsel %vm767, %v833, 0.0
        %865 = vadd.xlane.f32.xlu0 %v864
        %v866 = vpop.xlane.xlu0 %865
        %v867 = vsel %vm767, %v835, 0.0
        %868 = vadd.xlane.f32.xlu0 %v867
        %v869 = vpop.xlane.xlu0 %868
        %v870 = vsel %vm767, %v837, 0.0
        %871 = vadd.xlane.f32.xlu0 %v870
        %v872 = vpop.xlane.xlu0 %871
        %v873 = vsel %vm767, %v839, 0.0
        %874 = vadd.xlane.f32.xlu0 %v873
        %v875 = vpop.xlane.xlu0 %874
        %v876 = vsel %vm767, %v841, 0.0
        %877 = vadd.xlane.f32.xlu0 %v876
        %v878 = vpop.xlane.xlu0 %877
        %v879 = vsel %vm767, %v843, 0.0
        %880 = vadd.xlane.f32.xlu0 %v879
        %v881 = vpop.xlane.xlu0 %880
        %v882 = vsel %vm767, %v845, 0.0
        %883 = vadd.xlane.f32.xlu0 %v882
        %v884 = vpop.xlane.xlu0 %883
        %v885 = vsel %vm767, %v847, 0.0
        %886 = vadd.xlane.f32.xlu0 %v885
        %v887 = vpop.xlane.xlu0 %886
        %v888 = vsel %vm767, %v849, 0.0
        %889 = vadd.xlane.f32.xlu0 %v888
        %v890 = vpop.xlane.xlu0 %889
        %v891 = vsel %vm767, %v851, 0.0
        %892 = vadd.xlane.f32.xlu0 %v891
        %v893 = vpop.xlane.xlu0 %892
        %v894 = vsel %vm767, %v853, 0.0
        %895 = vadd.xlane.f32.xlu0 %v894
        %v896 = vpop.xlane.xlu0 %895
        %v897 = vsel %vm767, %v855, 0.0
        %898 = vadd.xlane.f32.xlu0 %v897
        %v899 = vpop.xlane.xlu0 %898
        %v900 = vsel %vm767, %v857, 0.0
        %901 = vadd.xlane.f32.xlu0 %v900
        %v902 = vpop.xlane.xlu0 %901
        %v903 = vsel %vm767, %v859, 0.0
        %904 = vadd.xlane.f32.xlu0 %v903
        %v905 = vpop.xlane.xlu0 %904
        %v906 = vsel %vm767, %v861, 0.0
        %907 = vadd.xlane.f32.xlu0 %v906
        %v908 = vpop.xlane.xlu0 %907
        %v909 = vsel %vm767, %v863, 0.0
        %910 = vadd.xlane.f32.xlu0 %v909
        %v911 = vpop.xlane.xlu0 %910
        %v912 = vrcp.pop %v866
        %v913 = vrcp.pop %v869
        %v914 = vrcp.pop %v872
        %v915 = vrcp.pop %v875
        %v916 = vrcp.pop %v878
        %v917 = vrcp.pop %v881
        %v918 = vrcp.pop %v884
        %v919 = vrcp.pop %v887
        %v920 = vrcp.pop %v890
        %v921 = vrcp.pop %v893
        %v922 = vrcp.pop %v896
        %v923 = vrcp.pop %v899
        %v924 = vrcp.pop %v902
        %v925 = vrcp.pop %v905
        %v926 = vrcp.pop %v908
        %v927 = vrcp.pop %v911
        %v928 = vmul.f32 %v833, %v912
        %v929 = vmul.f32 %v835, %v913
        %v930 = vmul.f32 %v837, %v914
        %v931 = vmul.f32 %v839, %v915
        %v932 = vmul.f32 %v841, %v916
        %v933 = vmul.f32 %v843, %v917
        %v934 = vmul.f32 %v845, %v918
        %v935 = vmul.f32 %v847, %v919
        %v936 = vmul.f32 %v849, %v920
        %v937 = vmul.f32 %v851, %v921
        %v938 = vmul.f32 %v853, %v922
        %v939 = vmul.f32 %v855, %v923
        %v940 = vmul.f32 %v857, %v924
        %v941 = vmul.f32 %v859, %v925
        %v942 = vmul.f32 %v861, %v926
        %v943 = vmul.f32 %v863, %v927
        %v948 = vlaneseq
        %v949 = vshrl.u32 %v948, 7
        %v950 = vsub.s32 0, %v949
        %v951 = vrot.slane %v719, %v950
        %v952 = vlaneseq
        %v953 = vshrl.u32 %v952, 7
        %v954 = vsub.s32 0, %v953
        %v955 = vrot.slane %v720, %v954
        %v956 = vlaneseq
        %v957 = vshrl.u32 %v956, 7
        %v958 = vsub.s32 0, %v957
        %v959 = vrot.slane %v721, %v958
        %v960 = vlaneseq
        %v961 = vshrl.u32 %v960, 7
        %v962 = vsub.s32 0, %v961
        %v963 = vrot.slane %v722, %v962
        %v968 = vmul.f32 %v928, %v951
        %v969 = vmul.f32 %v929, %v951
        %v970 = vmul.f32 %v930, %v951
        %v971 = vmul.f32 %v931, %v951
        %v972 = vmul.f32 %v932, %v955
        %v973 = vmul.f32 %v933, %v955
        %v974 = vmul.f32 %v934, %v955
        %v975 = vmul.f32 %v935, %v955
        %v976 = vmul.f32 %v936, %v959
        %v977 = vmul.f32 %v937, %v959
        %v978 = vmul.f32 %v938, %v959
        %v979 = vmul.f32 %v939, %v959
        %v980 = vmul.f32 %v940, %v963
        %v981 = vmul.f32 %v941, %v963
        %v982 = vmul.f32 %v942, %v963
        %v983 = vmul.f32 %v943, %v963
        %v984 = vpack.c.bf16 %v969, %v968
        %v985 = vpack.c.bf16 %v971, %v970
        %v986 = vpack.c.bf16 %v973, %v972
        %v987 = vpack.c.bf16 %v975, %v974
        %v988 = vpack.c.bf16 %v977, %v976
        %v989 = vpack.c.bf16 %v979, %v978
        %v990 = vpack.c.bf16 %v981, %v980
        %v991 = vpack.c.bf16 %v983, %v982
        %993 = vrot.lane.b32.xlu0 %v486, 64
        %v994 = vpop.permute.xlu0 %993
        %v997 = vsel %vm767, %v984, 0
        %v1000 = vsel %vm767, %v985, 0
        %1002 = vmatprep.subr.bf16.mxu0 0
        %1003 = vmatpush1.bf16.msra.mxu0 %v994
        %1004 = vmatprep.subr.bf16.mxu0 0
        %1005 = vmatpush1.bf16.msra.mxu0 0
        %1006 = vmatprep.subr.bf16.mxu0 0
        %1007 = vmatpush1.bf16.msra.mxu0 0
        %1008 = vmatprep.subr.bf16.mxu0 0
        %1009 = vmatpush1.bf16.msra.mxu0 0
        %1010 = vmatprep.subr.bf16.mxu0 0
        %1011 = vmatpush1.bf16.msra.mxu0 0
        %1012 = vmatprep.subr.bf16.mxu0 0
        %1013 = vmatpush1.bf16.msra.mxu0 0
        %1014 = vmatprep.subr.bf16.mxu0 0
        %1015 = vmatpush1.bf16.msra.mxu0 0
        %1016 = vmatprep.subr.bf16.mxu0 0
        %1017 = vmatpush1.bf16.msra.mxu0 0
        %1018 = vmatprep.subr.bf16.mxu0 0
        %1019 = vmatpush1.bf16.msra.mxu0 0
        %1020 = vmatprep.subr.bf16.mxu0 0
        %1021 = vmatpush1.bf16.msra.mxu0 0
        %1022 = vmatprep.subr.bf16.mxu0 0
        %1023 = vmatpush1.bf16.msra.mxu0 0
        %1024 = vmatprep.subr.bf16.mxu0 0
        %1025 = vmatpush1.bf16.msra.mxu0 0
        %1026 = vmatprep.subr.bf16.mxu0 0
        %1027 = vmatpush1.bf16.msra.mxu0 0
        %1028 = vmatprep.subr.bf16.mxu0 0
        %1029 = vmatpush1.bf16.msra.mxu0 0
        %1030 = vmatprep.subr.bf16.mxu0 0
        %1031 = vmatpush1.bf16.msra.mxu0 0
        %1032 = vmatprep.subr.bf16.mxu0 0
        %1033 = vmatpush1.bf16.msra.mxu0 0
        %1034 = vmatprep.mubr.bf16.mxu0 0
        %1035 = vmatmul.mubr.bf16.gmra.mrb[0].mxu0 %v997
        %v1036 = vpop.f32.mrb[0].mxu0
        %v1037 = vadd.f32 0.0, %v1036
        %v1038 = vpop.f32.mrb[0].mxu0
        %v1039 = vpop.f32.mrb[0].mxu0
        %v1040 = vadd.f32 0.0, %v1039
        %v1041 = vpop.f32.mrb[0].mxu0
        %1042 = vmatprep.mubr.bf16.mxu0 0
        %1043 = vmatmul.mubr.bf16.gmra.mrb[0].mxu0 %v1000
        %v1044 = vpop.f32.mrb[0].mxu0
        %v1045 = vadd.f32 0.0, %v1044
        %v1046 = vpop.f32.mrb[0].mxu0
        %v1047 = vpop.f32.mrb[0].mxu0
        %v1048 = vadd.f32 0.0, %v1047
        %v1049 = vpop.f32.mrb[0].mxu0
        %1050 = vdwg.mxu0
        %1052 = vrot.lane.b32.xlu0 %v487, 64
        %v1053 = vpop.permute.xlu0 %1052
        %v1056 = vsel %vm767, %v986, 0
        %v1059 = vsel %vm767, %v987, 0
        %1061 = vmatprep.subr.bf16.mxu0 0
        %1062 = vmatpush1.bf16.msra.mxu0 %v1053
        %1063 = vmatprep.subr.bf16.mxu0 0
        %1064 = vmatpush1.bf16.msra.mxu0 0
        %1065 = vmatprep.subr.bf16.mxu0 0
        %1066 = vmatpush1.bf16.msra.mxu0 0
        %1067 = vmatprep.subr.bf16.mxu0 0
        %1068 = vmatpush1.bf16.msra.mxu0 0
        %1069 = vmatprep.subr.bf16.mxu0 0
        %1070 = vmatpush1.bf16.msra.mxu0 0
        %1071 = vmatprep.subr.bf16.mxu0 0
        %1072 = vmatpush1.bf16.msra.mxu0 0
        %1073 = vmatprep.subr.bf16.mxu0 0
        %1074 = vmatpush1.bf16.msra.mxu0 0
        %1075 = vmatprep.subr.bf16.mxu0 0
        %1076 = vmatpush1.bf16.msra.mxu0 0
        %1077 = vmatprep.subr.bf16.mxu0 0
        %1078 = vmatpush1.bf16.msra.mxu0 0
        %1079 = vmatprep.subr.bf16.mxu0 0
        %1080 = vmatpush1.bf16.msra.mxu0 0
        %1081 = vmatprep.subr.bf16.mxu0 0
        %1082 = vmatpush1.bf16.msra.mxu0 0
        %1083 = vmatprep.subr.bf16.mxu0 0
        %1084 = vmatpush1.bf16.msra.mxu0 0
        %1085 = vmatprep.subr.bf16.mxu0 0
        %1086 = vmatpush1.bf16.msra.mxu0 0
        %1087 = vmatprep.subr.bf16.mxu0 0
        %1088 = vmatpush1.bf16.msra.mxu0 0
        %1089 = vmatprep.subr.bf16.mxu0 0
        %1090 = vmatpush1.bf16.msra.mxu0 0
        %1091 = vmatprep.subr.bf16.mxu0 0
        %1092 = vmatpush1.bf16.msra.mxu0 0
        %1093 = vmatprep.mubr.bf16.mxu0 0
        %1094 = vmatmul.mubr.bf16.gmra.mrb[0].mxu0 %v1056
        %v1095 = vpop.f32.mrb[0].mxu0
        %v1096 = vadd.f32 0.0, %v1095
        %v1097 = vpop.f32.mrb[0].mxu0
        %v1098 = vpop.f32.mrb[0].mxu0
        %v1099 = vadd.f32 0.0, %v1098
        %v1100 = vpop.f32.mrb[0].mxu0
        %1101 = vmatprep.mubr.bf16.mxu0 0
        %1102 = vmatmul.mubr.bf16.gmra.mrb[0].mxu0 %v1059
        %v1103 = vpop.f32.mrb[0].mxu0
        %v1104 = vadd.f32 0.0, %v1103
        %v1105 = vpop.f32.mrb[0].mxu0
        %v1106 = vpop.f32.mrb[0].mxu0
        %v1107 = vadd.f32 0.0, %v1106
        %v1108 = vpop.f32.mrb[0].mxu0
        %1109 = vdwg.mxu0
        %1111 = vrot.lane.b32.xlu0 %v488, 64
        %v1112 = vpop.permute.xlu0 %1111
        %v1115 = vsel %vm767, %v988, 0
        %v1118 = vsel %vm767, %v989, 0
        %1120 = vmatprep.subr.bf16.mxu0 0
        %1121 = vmatpush1.bf16.msra.mxu0 %v1112
        %1122 = vmatprep.subr.bf16.mxu0 0
        %1123 = vmatpush1.bf16.msra.mxu0 0
        %1124 = vmatprep.subr.bf16.mxu0 0
        %1125 = vmatpush1.bf16.msra.mxu0 0
        %1126 = vmatprep.subr.bf16.mxu0 0
        %1127 = vmatpush1.bf16.msra.mxu0 0
        %1128 = vmatprep.subr.bf16.mxu0 0
        %1129 = vmatpush1.bf16.msra.mxu0 0
        %1130 = vmatprep.subr.bf16.mxu0 0
        %1131 = vmatpush1.bf16.msra.mxu0 0
        %1132 = vmatprep.subr.bf16.mxu0 0
        %1133 = vmatpush1.bf16.msra.mxu0 0
        %1134 = vmatprep.subr.bf16.mxu0 0
        %1135 = vmatpush1.bf16.msra.mxu0 0
        %1136 = vmatprep.subr.bf16.mxu0 0
        %1137 = vmatpush1.bf16.msra.mxu0 0
        %1138 = vmatprep.subr.bf16.mxu0 0
        %1139 = vmatpush1.bf16.msra.mxu0 0
        %1140 = vmatprep.subr.bf16.mxu0 0
        %1141 = vmatpush1.bf16.msra.mxu0 0
        %1142 = vmatprep.subr.bf16.mxu0 0
        %1143 = vmatpush1.bf16.msra.mxu0 0
        %1144 = vmatprep.subr.bf16.mxu0 0
        %1145 = vmatpush1.bf16.msra.mxu0 0
        %1146 = vmatprep.subr.bf16.mxu0 0
        %1147 = vmatpush1.bf16.msra.mxu0 0
        %1148 = vmatprep.subr.bf16.mxu0 0
        %1149 = vmatpush1.bf16.msra.mxu0 0
        %1150 = vmatprep.subr.bf16.mxu0 0
        %1151 = vmatpush1.bf16.msra.mxu0 0
        %1152 = vmatprep.mubr.bf16.mxu0 0
        %1153 = vmatmul.mubr.bf16.gmra.mrb[0].mxu0 %v1115
        %v1154 = vpop.f32.mrb[0].mxu0
        %v1155 = vadd.f32 0.0, %v1154
        %v1156 = vpop.f32.mrb[0].mxu0
        %v1157 = vpop.f32.mrb[0].mxu0
        %v1158 = vadd.f32 0.0, %v1157
        %v1159 = vpop.f32.mrb[0].mxu0
        %1160 = vmatprep.mubr.bf16.mxu0 0
        %1161 = vmatmul.mubr.bf16.gmra.mrb[0].mxu0 %v1118
        %v1162 = vpop.f32.mrb[0].mxu0
        %v1163 = vadd.f32 0.0, %v1162
        %v1164 = vpop.f32.mrb[0].mxu0
        %v1165 = vpop.f32.mrb[0].mxu0
        %v1166 = vadd.f32 0.0, %v1165
        %v1167 = vpop.f32.mrb[0].mxu0
        %1168 = vdwg.mxu0
        %1170 = vrot.lane.b32.xlu0 %v489, 64
        %v1171 = vpop.permute.xlu0 %1170
        %v1174 = vsel %vm767, %v990, 0
        %v1177 = vsel %vm767, %v991, 0
        %1179 = vmatprep.subr.bf16.mxu0 0
        %1180 = vmatpush1.bf16.msra.mxu0 %v1171
        %1181 = vmatprep.subr.bf16.mxu0 0
        %1182 = vmatpush1.bf16.msra.mxu0 0
        %1183 = vmatprep.subr.bf16.mxu0 0
        %1184 = vmatpush1.bf16.msra.mxu0 0
        %1185 = vmatprep.subr.bf16.mxu0 0
        %1186 = vmatpush1.bf16.msra.mxu0 0
        %1187 = vmatprep.subr.bf16.mxu0 0
        %1188 = vmatpush1.bf16.msra.mxu0 0
        %1189 = vmatprep.subr.bf16.mxu0 0
        %1190 = vmatpush1.bf16.msra.mxu0 0
        %1191 = vmatprep.subr.bf16.mxu0 0
        %1192 = vmatpush1.bf16.msra.mxu0 0
        %1193 = vmatprep.subr.bf16.mxu0 0
        %1194 = vmatpush1.bf16.msra.mxu0 0
        %1195 = vmatprep.subr.bf16.mxu0 0
        %1196 = vmatpush1.bf16.msra.mxu0 0
        %1197 = vmatprep.subr.bf16.mxu0 0
        %1198 = vmatpush1.bf16.msra.mxu0 0
        %1199 = vmatprep.subr.bf16.mxu0 0
        %1200 = vmatpush1.bf16.msra.mxu0 0
        %1201 = vmatprep.subr.bf16.mxu0 0
        %1202 = vmatpush1.bf16.msra.mxu0 0
        %1203 = vmatprep.subr.bf16.mxu0 0
        %1204 = vmatpush1.bf16.msra.mxu0 0
        %1205 = vmatprep.subr.bf16.mxu0 0
        %1206 = vmatpush1.bf16.msra.mxu0 0
        %1207 = vmatprep.subr.bf16.mxu0 0
        %1208 = vmatpush1.bf16.msra.mxu0 0
        %1209 = vmatprep.subr.bf16.mxu0 0
        %1210 = vmatpush1.bf16.msra.mxu0 0
        %1211 = vmatprep.mubr.bf16.mxu0 0
        %1212 = vmatmul.mubr.bf16.gmra.mrb[0].mxu0 %v1174
        %v1213 = vpop.f32.mrb[0].mxu0
        %v1214 = vadd.f32 0.0, %v1213
        %v1215 = vpop.f32.mrb[0].mxu0
        %v1216 = vpop.f32.mrb[0].mxu0
        %v1217 = vadd.f32 0.0, %v1216
        %v1218 = vpop.f32.mrb[0].mxu0
        %1219 = vmatprep.mubr.bf16.mxu0 0
        %1220 = vmatmul.mubr.bf16.gmra.mrb[0].mxu0 %v1177
        %v1221 = vpop.f32.mrb[0].mxu0
        %v1222 = vadd.f32 0.0, %v1221
        %v1223 = vpop.f32.mrb[0].mxu0
        %v1224 = vpop.f32.mrb[0].mxu0
        %v1225 = vadd.f32 0.0, %v1224
        %v1226 = vpop.f32.mrb[0].mxu0
        %1227 = vdwg.mxu0
        %v1228 = vld [vmem:[%s2] sm:$0xff]
        %v1229 = vld [vmem:[%s2 + $0x8] sm:$0xff]
        %v1230 = vld [vmem:[%s2 + $0x10] sm:$0xff]
        %v1231 = vld [vmem:[%s2 + $0x18] sm:$0xff]
        %v1232 = vmul.f32 %v1037, %v1228
        %v1233 = vmul.f32 %v1040, %v1229
        %v1234 = vmul.f32 %v1045, %v1230
        %v1235 = vmul.f32 %v1048, %v1231
        %v1236 = vmul.f32 %v1096, %v1228
        %v1237 = vmul.f32 %v1099, %v1229
        %v1238 = vmul.f32 %v1104, %v1230
        %v1239 = vmul.f32 %v1107, %v1231
        %v1240 = vmul.f32 %v1155, %v1228
        %v1241 = vmul.f32 %v1158, %v1229
        %v1242 = vmul.f32 %v1163, %v1230
        %v1243 = vmul.f32 %v1166, %v1231
        %v1244 = vmul.f32 %v1214, %v1228
        %v1245 = vmul.f32 %v1217, %v1229
        %v1246 = vmul.f32 %v1222, %v1230
        %v1247 = vmul.f32 %v1225, %v1231
        %v1248 = vadd.f32 %v1232, %v1233
        %v1249 = vadd.f32 %v1236, %v1237
        %v1250 = vadd.f32 %v1240, %v1241
        %v1251 = vadd.f32 %v1244, %v1245
        %v1252 = vadd.f32 %v1248, %v1234
        %v1253 = vadd.f32 %v1249, %v1238
        %v1254 = vadd.f32 %v1250, %v1242
        %v1255 = vadd.f32 %v1251, %v1246
        %v1256 = vadd.f32 %v1252, %v1235
        %v1257 = vadd.f32 %v1253, %v1239
        %v1258 = vadd.f32 %v1254, %v1243
        %v1259 = vadd.f32 %v1255, %v1247
        %v1260 = vld [vmem:[%s1] sm:$0xff]
        %v1261 = vadd.f32 %v1260, %v1256
        %v1262 = vadd.f32 %v1260, %v1257
        %v1263 = vadd.f32 %v1260, %v1258
        %v1264 = vadd.f32 %v1260, %v1259
        %v1265 = vpack.c.bf16 %v1262, %v1261
        %v1266 = vpack.c.bf16 %v1264, %v1263
        %v1267 = vld [vmem:[%s7] sm:$0xf]
        %v1268 = vld [vmem:[%s7 + $0x4] sm:$0xf]
        %v1269 = vld [vmem:[%s7 + $0x8] sm:$0xf]
        %v1270 = vld [vmem:[%s7 + $0xc] sm:$0xf]
        %v1271 = vld [vmem:[%s7 + $0x10] sm:$0xf]
        %v1272 = vld [vmem:[%s7 + $0x14] sm:$0xf]
        %v1273 = vld [vmem:[%s7 + $0x18] sm:$0xf]
        %v1274 = vld [vmem:[%s7 + $0x1c] sm:$0xf]
        %v1275 = vld [vmem:[%s8] sm:$0x1]
        %v1277 = vlaneseq
        %v1278 = vshrl.u32 %v1277, 7
        %v1279 = vsub.s32 0, %v1278
        %v1280 = vrot.slane %v1275, %v1279
        %v1290 = vunpack.c.l.b16 %v1267
        %v1291 = vunpack.c.l.b16 %v1268
        %v1292 = vunpack.c.l.b16 %v1269
        %v1293 = vunpack.c.l.b16 %v1270
        %v1294 = vunpack.c.l.b16 %v1271
        %v1295 = vunpack.c.l.b16 %v1272
        %v1296 = vunpack.c.l.b16 %v1273
        %v1297 = vunpack.c.l.b16 %v1274
        %v1298 = vpack.c.b16 %v1291, %v1290
        %v1299 = vpack.c.b16 %v1293, %v1292
        %v1300 = vpack.c.b16 %v1295, %v1294
        %v1301 = vpack.c.b16 %v1297, %v1296
        %v1307 = vsel %vm504, %v1265, 0
        %v1310 = vsel %vm504, %v1266, 0
        %1312 = vmatprep.subr.bf16.mxu0 0
        %1313 = vmatpush1.bf16.msra.mxu0 %v1298
        %1314 = vmatprep.subr.bf16.mxu0 0
        %1315 = vmatpush1.bf16.msra.mxu0 %v1299
        %1316 = vmatprep.subr.bf16.mxu0 0
        %1317 = vmatpush1.bf16.msra.mxu0 %v1300
        %1318 = vmatprep.subr.bf16.mxu0 0
        %1319 = vmatpush1.bf16.msra.mxu0 %v1301
        %1320 = vmatprep.subr.bf16.mxu0 0
        %1321 = vmatpush1.bf16.msra.mxu0 0
        %1322 = vmatprep.subr.bf16.mxu0 0
        %1323 = vmatpush1.bf16.msra.mxu0 0
        %1324 = vmatprep.subr.bf16.mxu0 0
        %1325 = vmatpush1.bf16.msra.mxu0 0
        %1326 = vmatprep.subr.bf16.mxu0 0
        %1327 = vmatpush1.bf16.msra.mxu0 0
        %1328 = vmatprep.subr.bf16.mxu0 0
        %1329 = vmatpush1.bf16.msra.mxu0 0
        %1330 = vmatprep.subr.bf16.mxu0 0
        %1331 = vmatpush1.bf16.msra.mxu0 0
        %1332 = vmatprep.subr.bf16.mxu0 0
        %1333 = vmatpush1.bf16.msra.mxu0 0
        %1334 = vmatprep.subr.bf16.mxu0 0
        %1335 = vmatpush1.bf16.msra.mxu0 0
        %1336 = vmatprep.subr.bf16.mxu0 0
        %1337 = vmatpush1.bf16.msra.mxu0 0
        %1338 = vmatprep.subr.bf16.mxu0 0
        %1339 = vmatpush1.bf16.msra.mxu0 0
        %1340 = vmatprep.subr.bf16.mxu0 0
        %1341 = vmatpush1.bf16.msra.mxu0 0
        %1342 = vmatprep.subr.bf16.mxu0 0
        %1343 = vmatpush1.bf16.msra.mxu0 0
        %1344 = vmatprep.mubr.bf16.mxu0 0
        %1345 = vmatmul.mubr.bf16.gmra.mrb[0].mxu0 %v1307
        %v1346 = vpop.f32.mrb[0].mxu0
        %v1347 = vadd.f32 %v1280, %v1346
        %v1348 = vpop.f32.mrb[0].mxu0
        %v1349 = vpop.f32.mrb[0].mxu0
        %v1350 = vadd.f32 %v1280, %v1349
        %v1351 = vpop.f32.mrb[0].mxu0
        %1352 = vmatprep.mubr.bf16.mxu0 0
        %1353 = vmatmul.mubr.bf16.gmra.mrb[0].mxu0 %v1310
        %v1354 = vpop.f32.mrb[0].mxu0
        %v1355 = vadd.f32 %v1280, %v1354
        %v1356 = vpop.f32.mrb[0].mxu0
        %v1357 = vpop.f32.mrb[0].mxu0
        %v1358 = vadd.f32 %v1280, %v1357
        %v1359 = vpop.f32.mrb[0].mxu0
        %1360 = vdwg.mxu0
        %v1361 = vmax.f32 %v1347, 0.0
        %v1362 = vmax.f32 %v1350, 0.0
        %v1363 = vmax.f32 %v1355, 0.0
        %v1364 = vmax.f32 %v1358, 0.0
        %v1365 = vadd.f32 %v1261, %v1361
        %v1366 = vadd.f32 %v1262, %v1362
        %v1367 = vadd.f32 %v1263, %v1363
        %v1368 = vadd.f32 %v1264, %v1364
        %1369 = vst.msk [vmem:[%s342] sm:$0xff] %vm504, %v1365
        %1370 = vst.msk [vmem:[%s342 + $0x8] sm:$0xff] %vm504, %v1366
        %1371 = vst.msk [vmem:[%s342 + $0x10] sm:$0xff] %vm504, %v1367
        %1372 = vst.msk [vmem:[%s342 + $0x18] sm:$0xff] %vm504, %v1368
        %s1373 = sand.u32 %s230, 1
        %s1374 = scalar_lea.sflag [#allocation3], %s1373
        %s1375 = sand.u32 %s230, 1
        %s1376 = smul.addr %s1375, 32
        %s1377 = scalar_lea.vmem [#allocation2], %s1376
        // Predicated region
        $region57: #{pma_forward.1} parent=55 // pred_check
          %p1378 = pneg %p240
        $region58: #{pma_forward.1} parent=55 // pred_check_branch
          %1380 = sbr.rel (%p1378) target = $region60
        $region59: #{pma_forward.1} parent=55 // pred_region
          %s1381 = smul.u32 4, %s23
          %s1383 = ssub.s32 512, 512
          %1384 = vsyncadd %s1374, %s1383
          %s1385 = smul.addr %s1381, 128
          %s1386 = scalar_lea.hbm %s9, %s1385
          %s1387 = sshll.u32 %s1377, 4
          %s1388 = int_to_ptr.vmem [resolvable:$true] %s1387
          %1393 = dma.vmem_to_hbm [thread:$0]  %s1388, 512, %s1386, %s1374, 128, 128, 8
        $region60: #{pma_forward.1} parent=55 // pred_fallthru
          _
      $region56: #{pma_forward.1} parent=5 // pred_fallthru
        _
      %p1394 = scmp.le.s32.totalorder 2, %s18
      // Predicated region
      $region61: #{pma_forward.1} parent=5 // pred_check
        %p1395 = pneg %p1394
      $region62: #{pma_forward.1} parent=5 // pred_check_branch
        %1397 = sbr.rel (%p1395) target = $region64
      $region63: #{pma_forward.1} parent=5 // pred_region
        %s1398 = ssub.s32 %s18, 2
        // Predicated region
        $region65: #{pma_forward.1} parent=63 // pred_check
          %p1399 = pneg %p246
        $region66: #{pma_forward.1} parent=63 // pred_check_branch
          %1401 = sbr.rel (%p1399) target = $region68
        $region67: #{pma_forward.1} parent=63 // pred_region
          %s1402 = sand.u32 %s231, 1
          %s1403 = scalar_lea.sflag [#allocation3], %s1402
          %s1404 = sand.u32 %s231, 1
          %s1405 = smul.addr %s1404, 32
          %s1406 = scalar_lea.vmem [#allocation2], %s1405
          %1407 = dma.done %s1403, 512
        $region68: #{pma_forward.1} parent=63 // pred_fallthru
          _
      $region64: #{pma_forward.1} parent=5 // pred_fallthru
        _
    $region6: #{pma_forward.1} parent=1 // loop_footer
      %s22 = sadd.s32 1, %s18
    $region7: #{pma_forward.1} parent=1 // loop_footer_branch
      %17 = sbr.rel target = $region3
    $region8: #{pma_forward.1} parent=1 // loop_exit
      _
    %1408 = vsyncpa [#allocation3], 1
    %s1409 = scalar_lea.sflag [#allocation3], 1
    %1410 = vsyncpa %s1409, 1

</llo_original>
